<compile_context>
chip_gen: v7x
topology: tpu7x:2x2x1
jax: 0.10.0
libtpu: 0.0.40
codegen_flags: <defaults>
</compile_context>

<pallas_src>
import jax
import jax.numpy as jnp
from jax.experimental import pallas as pl
from jax.experimental.pallas import tpu as pltpu


def _decoder_head_kernel(wt_ref, b_ref, x_ref, o_ref):
    # wt_ref : (d_model, F)   compute dtype, VMEM-resident across the grid
    # b_ref  : (1, F)         f32,           VMEM-resident across the grid
    # x_ref  : (TN, d_model)  compute dtype, one token tile (natural layout)
    # o_ref  : (TN, F)        f32
    o_ref[...] = (
        jnp.dot(x_ref[...], wt_ref[...], preferred_element_type=jnp.float32)
        + b_ref[...]
    )


def _pick_token_tile(n8: int) -> int:
    """Pick the token-tile size (sublane axis).

    Preference order (per perf review):
      * single resident block when the sublane-rounded token count is small,
      * a divisor of n8 in 256..640 giving an EVEN tile count (balanced v7x
        megacore sharding) with zero padding,
      * any divisor in range (zero padding),
      * fall back to 512 (pads only the tail tile).
    """
    if n8 <= 640:
        return n8
    for cand in (640, 512, 384, 320, 256):
        if n8 % cand == 0 and (n8 // cand) % 2 == 0:
            return cand
    for cand in (640, 512, 384, 320, 256, 128):
        if n8 % cand == 0:
            return cand
    return 512


def transformer_decoder_forward(x, weight, bias, *, compute_dtype=jnp.bfloat16):
    """Replicates TransformerDecoder.forward: y = Linear(x); return y.view(-1, 2).

    x      : (..., d_model)  float32
    weight : (F, d_model)    float32  (torch nn.Linear convention)
    bias   : (F,)            float32
    returns: (-1, 2)         float32
    """
    d_model = x.shape[-1]
    F = weight.shape[0]

    x2d = x.reshape(-1, d_model)
    N = x2d.shape[0]

    n8 = ((N + 7) // 8) * 8          # sublane rounding only
    TN = _pick_token_tile(n8)
    n_pad = ((N + TN - 1) // TN) * TN
    grid_n = n_pad // TN

    # Natural layout, no transpose; pad only when unavoidable.
    if n_pad != N:
        x2d = jnp.pad(x2d, ((0, n_pad - N), (0, 0)))

    # bf16 halves HBM bytes of the dominant activation read; MXU accumulates in f32.
    x_in = x2d.astype(compute_dtype)
    wT = weight.T.astype(compute_dtype)          # (d_model, F), a few KB, once
    b2d = bias.reshape(1, F).astype(jnp.float32)

    isz = jnp.dtype(compute_dtype).itemsize
    cost = pl.CostEstimate(
        flops=2 * N * d_model * F,
        transcendentals=0,
        bytes_accessed=isz * (N * d_model + d_model * F) + 4 * (F + N * F),
    )

    y = pl.pallas_call(
        _decoder_head_kernel,
        out_shape=jax.ShapeDtypeStruct((n_pad, F), jnp.float32),
        grid=(grid_n,),
        in_specs=[
            pl.BlockSpec((d_model, F), lambda i: (0, 0)),    # weight^T (resident)
            pl.BlockSpec((1, F), lambda i: (0, 0)),          # bias     (resident)
            pl.BlockSpec((TN, d_model), lambda i: (i, 0)),   # token tile
        ],
        out_specs=pl.BlockSpec((TN, F), lambda i: (i, 0)),
        compiler_params=pltpu.CompilerParams(
            dimension_semantics=("parallel",),
        ),
        cost_estimate=cost,
    )(wT, b2d, x_in)

    if n_pad != N:
        y = y[:N]
    return y.reshape(-1, 2)


if __name__ == "__main__":
    # Module spec: d_model=512, output_dim=2 -> linear out features F=4.
    # Token grid (64, 20) mirrors the original script's input shape -> N=1280.
    d_model = 512
    output_dim = 2
    F = output_dim * 2
    batch, seq = 64, 20

    key = jax.random.PRNGKey(0)
    kx, kw, kb = jax.random.split(key, 3)

    x = jax.random.normal(kx, (batch, seq, d_model), dtype=jnp.float32)
    # Deterministic parameter init (mimicking nn.Linear's uniform init range).
    bound = 1.0 / (d_model ** 0.5)
    weight = jax.random.uniform(kw, (F, d_model), jnp.float32, -bound, bound)
    bias = jax.random.uniform(kb, (F,), jnp.float32, -bound, bound)

    out = transformer_decoder_forward(x, weight, bias)
    out = jax.block_until_ready(out)

    # Pure-JAX f32 reference; tolerance covers the bf16 activation/weight cast.
    ref = (x.reshape(-1, d_model) @ weight.T + bias).reshape(-1, 2)
    assert out.shape == (batch * seq * output_dim, 2)
    assert jnp.allclose(out, ref, atol=2e-2, rtol=2e-2), float(
        jnp.max(jnp.abs(out - ref))
    )

    print("KERNEL_OK")
</pallas_src>

<mosaic_0001>
module attributes {stable_mosaic.version = 11 : i64} {
  func.func @_decoder_head_kernel(%arg0: i32, %arg1: memref<512x4xbf16, #tpu.memory_space<vmem>>, %arg2: memref<1x4xf32, #tpu.memory_space<vmem>>, %arg3: memref<640x512xbf16, #tpu.memory_space<vmem>>, %arg4: memref<640x4xf32, #tpu.memory_space<vmem>>) attributes {dimension_semantics = [#tpu.dimension_semantics<parallel>], iteration_bounds = array<i64: 2>, scalar_prefetch = 0 : i64, scratch_operands = 0 : i64, tpu.core_type = #tpu.core_type<tc>, window_params = [{pipeline_mode = #tpu.pipeline_mode<synchronous>, transform_indices = @transform_0, window_bounds = array<i64: 512, 4>}, {pipeline_mode = #tpu.pipeline_mode<synchronous>, transform_indices = @transform_1, window_bounds = array<i64: 1, 4>}, {transform_indices = @transform_2, window_bounds = array<i64: 640, 512>}, {transform_indices = @transform_3, window_bounds = array<i64: 640, 4>}]} {
    %c0 = arith.constant 0 : index
    %c0_0 = arith.constant 0 : index
    %0 = vector.load %arg3[%c0, %c0_0] : memref<640x512xbf16, #tpu.memory_space<vmem>>, vector<640x512xbf16>
    %c0_1 = arith.constant 0 : index
    %c0_2 = arith.constant 0 : index
    %1 = vector.load %arg1[%c0_1, %c0_2] : memref<512x4xbf16, #tpu.memory_space<vmem>>, vector<512x4xbf16>
    %cst = arith.constant dense<0.000000e+00> : vector<640x4xf32>
    %2 = tpu.matmul %0, %1, %cst {dimension_numbers = #tpu.dot_dimension_numbers<[1], [0], [0], [1], [0, 0, 1, 1], [], []>} : vector<640x512xbf16>, vector<512x4xbf16>, vector<640x4xf32> -> vector<640x4xf32>
    %c0_3 = arith.constant 0 : index
    %c0_4 = arith.constant 0 : index
    %3 = vector.load %arg2[%c0_3, %c0_4] : memref<1x4xf32, #tpu.memory_space<vmem>>, vector<1x4xf32>
    %4 = vector.broadcast %3 : vector<1x4xf32> to vector<640x4xf32>
    %5 = arith.addf %2, %4 : vector<640x4xf32>
    %c0_5 = arith.constant 0 : index
    %c0_6 = arith.constant 0 : index
    %6 = vector.load %arg4[%c0_5, %c0_6] : memref<640x4xf32, #tpu.memory_space<vmem>>, vector<640x4xf32>
    tpu.vector_store %arg4[%c0_5, %c0_6], %5 {strides = array<i32>} : memref<640x4xf32, #tpu.memory_space<vmem>>, vector<640x4xf32>,
    return
  }
  func.func @transform_0(%arg0: i32) -> (i32, i32) {
    %c0_i32 = arith.constant 0 : i32
    %c0_i32_0 = arith.constant 0 : i32
    %c0_i32_1 = arith.constant 0 : i32
    return %c0_i32, %c0_i32_0 : i32, i32
  }
  func.func @transform_1(%arg0: i32) -> (i32, i32) {
    %c0_i32 = arith.constant 0 : i32
    %c0_i32_0 = arith.constant 0 : i32
    %c0_i32_1 = arith.constant 0 : i32
    return %c0_i32, %c0_i32_0 : i32, i32
  }
  func.func @transform_2(%arg0: i32) -> (i32, i32) {
    %c0_i32 = arith.constant 0 : i32
    %c0_i32_0 = arith.constant 0 : i32
    return %arg0, %c0_i32 : i32, i32
  }
  func.func @transform_3(%arg0: i32) -> (i32, i32) {
    %c0_i32 = arith.constant 0 : i32
    %c0_i32_0 = arith.constant 0 : i32
    return %arg0, %c0_i32 : i32, i32
  }
}

</mosaic_0001>

<llo_original>
// kernel: tpu_custom_call.1
$region0: #{tpu_custom_call.1}
  #allocation0 [shape = 'u32[]', space=smem, size = 0x4, offset = 0x4, fixed_abs, tag = 'smem constant byte address 0x4 - core index']
  #allocation1 [shape = 'u32[144,128]{1,0:T(1,128)}', space=vmem, size = 0x12000, scoped, tag = 'internal scratch']
  %s0 = inlined_call_operand.vmem [shape: bf16[512,4], index: 0, kind: input, shape index: {}]
  %s1 = inlined_call_operand.hbm [shape: f32[1,4], index: 1, kind: input, shape index: {}]
  %s2 = inlined_call_operand.hbm [shape: bf16[1280,512], index: 2, kind: input, shape index: {}]
  %s3 = inlined_call_operand.vmem [shape: f32[1280,4], index: 3, kind: output, shape index: {}]
  %s4 = sld [smem:[#allocation0]]
  $region53: #{tpu_custom_call.1} parent=0
    _
  %s6 = ssub.s32 1, %s4
  %s7 = scalar_select 0, %s6, %s4
  $region1: #{tpu_custom_call.1} parent=0
    #allocation2 [shape = 'u8[512]{0}', space=vmem, size = 0x400, scoped, tag = 'input window, operand 1, single buffered']
    #allocation3 [shape = 's32[2]{0}', space=sflag, size = 0x8, scoped, tag = 'scoped memory for tpu_custom_call.1']
    #allocation4 [shape = 'u8[1310720]{0}', space=vmem, size = 0x140000, scoped, tag = 'input window, operand 2']
    #allocation5 [shape = 's32[2]{0}', space=sflag, size = 0x8, scoped, tag = 'scoped memory for tpu_custom_call.1']
    %8 = vsyncpa [#allocation3], 0
    %9 = vsyncpa [#allocation5], 0
    %s10 = scalar_lea.sflag [#allocation5], 1
    %11 = vsyncpa %s10, 0
    loop: start=0, step=1, limit=4
    $region2: #{tpu_custom_call.1} parent=1 // loop_pre_header
      _
    $region3: #{tpu_custom_call.1} parent=1 // loop_header
      %s13 = sphi 0, %s17
      %p14 = scmp.ge.s32.totalorder %s13, 4
      %s21 = sphi 0, %s21
      %s23 = sphi 0, %s21
      %s24 = sphi 0, %s23
      %s38 = sphi 0, %s24
      %s42 = sphi 0, %s42
      %s44 = sphi 0, %s42
      %s45 = sphi 0, %s44
      %s59 = sphi 0, %s45
      %s65 = sphi 0, %s67
      %s68 = sphi 0, %s65
      %s69 = sphi 0, %s68
      %s85 = sphi 0, %s69
      %s91 = sphi 0, %s93
      %s94 = sphi 0, %s91
      %s95 = sphi 0, %s94
      %s111 = sphi 0, %s95
    $region4: #{tpu_custom_call.1} parent=1 // loop_header_branch
      %16 = sbr.rel (%p14) target = $region8
    $region5: #{tpu_custom_call.1} parent=1 // loop_body
      %s18 = ssub.s32 %s13, 1
      %s19 = ssub.s32 %s13, 2
      %s20 = sadd.s32 %s13, 1
      %s22 = sadd.s32 %s21, 1
      %p25 = scmp.eq.s32.totalorder %s13, 1
      %p26 = scmp.ne.s32.totalorder %s21, %s23
      %p27 = scmp.eq.s32.totalorder %s13, 0
      %p28 = por %p26, %p27
      %p29 = scmp.ne.s32.totalorder %s21, %s23
      %p30 = scmp.eq.s32.totalorder %s18, 1
      %p31 = por %p29, %p30
      %p32 = scmp.ne.s32.totalorder %s23, %s24
      %p33 = scmp.eq.s32.totalorder %s18, 0
      %p34 = por %p32, %p33
      %p35 = scmp.ne.s32.totalorder %s23, %s24
      %p36 = scmp.eq.s32.totalorder %s19, 1
      %p37 = por %p35, %p36
      %p39 = scmp.ne.s32.totalorder %s24, %s38
      %p40 = scmp.eq.s32.totalorder %s19, 0
      %p41 = por %p39, %p40
      %s43 = sadd.s32 %s42, 1
      %p46 = scmp.eq.s32.totalorder %s13, 1
      %p47 = scmp.ne.s32.totalorder %s42, %s44
      %p48 = scmp.eq.s32.totalorder %s13, 0
      %p49 = por %p47, %p48
      %p50 = scmp.ne.s32.totalorder %s42, %s44
      %p51 = scmp.eq.s32.totalorder %s18, 1
      %p52 = por %p50, %p51
      %p53 = scmp.ne.s32.totalorder %s44, %s45
      %p54 = scmp.eq.s32.totalorder %s18, 0
      %p55 = por %p53, %p54
      %p56 = scmp.ne.s32.totalorder %s44, %s45
      %p57 = scmp.eq.s32.totalorder %s19, 1
      %p58 = por %p56, %p57
      %p60 = scmp.ne.s32.totalorder %s45, %s59
      %p61 = scmp.eq.s32.totalorder %s19, 0
      %p62 = por %p60, %p61
      %s63 = ssub.s32 %s13, %s20
      %p64 = scmp.eq.s32.totalorder %s63, 0
      %s66 = sadd.s32 %s65, 1
      %s67 = scalar_select %p64, %s65, %s66
      %p70 = pneg %p64
      %p71 = scmp.eq.s32.totalorder %s13, 1
      %p72 = por %p70, %p71
      %p73 = scmp.ne.s32.totalorder %s65, %s68
      %p74 = scmp.eq.s32.totalorder %s13, 0
      %p75 = por %p73, %p74
      %p76 = scmp.ne.s32.totalorder %s65, %s68
      %p77 = scmp.eq.s32.totalorder %s18, 1
      %p78 = por %p76, %p77
      %p79 = scmp.ne.s32.totalorder %s68, %s69
      %p80 = scmp.eq.s32.totalorder %s18, 0
      %p81 = por %p79, %p80
      %p82 = scmp.ne.s32.totalorder %s68, %s69
      %p83 = scmp.eq.s32.totalorder %s19, 1
      %p84 = por %p82, %p83
      %p86 = scmp.ne.s32.totalorder %s69, %s85
      %p87 = scmp.eq.s32.totalorder %s19, 0
      %p88 = por %p86, %p87
      %s89 = ssub.s32 %s13, %s20
      %p90 = scmp.eq.s32.totalorder %s89, 0
      %s92 = sadd.s32 %s91, 1
      %s93 = scalar_select %p90, %s91, %s92
      %p96 = pneg %p90
      %p97 = scmp.eq.s32.totalorder %s13, 1
      %p98 = por %p96, %p97
      %p99 = scmp.ne.s32.totalorder %s91, %s94
      %p100 = scmp.eq.s32.totalorder %s13, 0
      %p101 = por %p99, %p100
      %p102 = scmp.ne.s32.totalorder %s91, %s94
      %p103 = scmp.eq.s32.totalorder %s18, 1
      %p104 = por %p102, %p103
      %p105 = scmp.ne.s32.totalorder %s94, %s95
      %p106 = scmp.eq.s32.totalorder %s18, 0
      %p107 = por %p105, %p106
      %p108 = scmp.ne.s32.totalorder %s94, %s95
      %p109 = scmp.eq.s32.totalorder %s19, 1
      %p110 = por %p108, %p109
      %p112 = scmp.ne.s32.totalorder %s95, %s111
      %p113 = scmp.eq.s32.totalorder %s19, 0
      %p114 = por %p112, %p113
      %p115 = scmp.le.s32.totalorder 1, %s13
      %p116 = scmp.lt.s32.totalorder %s13, 3
      %p117 = pnand %p115, %p116
      %p118 = pneg %p117
      // Predicated region
      $region9: #{tpu_custom_call.1} parent=5 // pred_check
        _
      $region10: #{tpu_custom_call.1} parent=5 // pred_check_branch
        %120 = sbr.rel (%p117) target = $region12
      $region11: #{tpu_custom_call.1} parent=5 // pred_region
        %s121 = ssub.s32 %s13, 1
        // Predicated region
        $region13: #{tpu_custom_call.1} parent=11 // pred_check
          %p122 = pneg %p34
        $region14: #{tpu_custom_call.1} parent=11 // pred_check_branch
          %124 = sbr.rel (%p122) target = $region16
        $region15: #{tpu_custom_call.1} parent=11 // pred_region
          _
        $region16: #{tpu_custom_call.1} parent=11 // pred_fallthru
          _
        // Predicated region
        $region17: #{tpu_custom_call.1} parent=11 // pred_check
          %p125 = pneg %p55
        $region18: #{tpu_custom_call.1} parent=11 // pred_check_branch
          %127 = sbr.rel (%p125) target = $region20
        $region19: #{tpu_custom_call.1} parent=11 // pred_region
          %s129 = ssub.s32 16, 16
          %130 = vsyncadd [#allocation3], %s129
          %s132 = sshll.u32 [#allocation2], 4
          %s133 = int_to_ptr.vmem [resolvable:$true] %s132
          %135 = dma.hbm_to_vmem [thread:$0]  %s1, 16, %s133, [#allocation3]
        $region20: #{tpu_custom_call.1} parent=11 // pred_fallthru
          _
      $region12: #{tpu_custom_call.1} parent=5 // pred_fallthru
        _
      %p136 = scmp.lt.s32.totalorder %s13, 2
      // Predicated region
      $region21: #{tpu_custom_call.1} parent=5 // pred_check
        %p137 = pneg %p136
      $region22: #{tpu_custom_call.1} parent=5 // pred_check_branch
        %139 = sbr.rel (%p137) target = $region24
      $region23: #{tpu_custom_call.1} parent=5 // pred_region
        // Predicated region
        $region25: #{tpu_custom_call.1} parent=23 // pred_check
          %p140 = pneg %p75
        $region26: #{tpu_custom_call.1} parent=23 // pred_check_branch
          %142 = sbr.rel (%p140) target = $region28
        $region27: #{tpu_custom_call.1} parent=23 // pred_region
          %s143 = sand.u32 %s65, 1
          %s144 = scalar_lea.sflag [#allocation5], %s143
          %s145 = sand.u32 %s65, 1
          %s146 = smul.addr %s145, 1280
          %s147 = scalar_lea.vmem [#allocation4], %s146
          %s148 = smul.u32 80, %s13
          %s150 = ssub.s32 20480, 20480
          %151 = vsyncadd %s144, %s150
          %s152 = smul.addr %s148, 4
          %s153 = smul.addr %s152, 64
          %s154 = scalar_lea.hbm %s2, %s153
          %s155 = sshll.u32 %s147, 4
          %s156 = int_to_ptr.vmem [resolvable:$true] %s155
          %161 = dma.hbm_to_vmem [thread:$0]  %s154, 20480, %s156, %s144, 256, 256, 16
        $region28: #{tpu_custom_call.1} parent=23 // pred_fallthru
          _
      $region24: #{tpu_custom_call.1} parent=5 // pred_fallthru
        _
      %p162 = scmp.le.s32.totalorder 1, %s13
      %p163 = scmp.lt.s32.totalorder %s13, 3
      %p164 = pnand %p162, %p163
      %p165 = pneg %p164
      // Predicated region
      $region29: #{tpu_custom_call.1} parent=5 // pred_check
        _
      $region30: #{tpu_custom_call.1} parent=5 // pred_check_branch
        %167 = sbr.rel (%p164) target = $region32
      $region31: #{tpu_custom_call.1} parent=5 // pred_region
        %s168 = ssub.s32 %s13, 1
        // Predicated region
        $region33: #{tpu_custom_call.1} parent=31 // pred_check
          %p169 = pneg %p55
        $region34: #{tpu_custom_call.1} parent=31 // pred_check_branch
          %171 = sbr.rel (%p169) target = $region36
        $region35: #{tpu_custom_call.1} parent=31 // pred_region
          %172 = dma.done [#allocation3], 16
        $region36: #{tpu_custom_call.1} parent=31 // pred_fallthru
          _
        %s173 = sand.u32 %s68, 1
        %s174 = scalar_lea.sflag [#allocation5], %s173
        %s175 = sand.u32 %s68, 1
        %s176 = smul.addr %s175, 1280
        %s177 = scalar_lea.vmem [#allocation4], %s176
        // Predicated region
        $region37: #{tpu_custom_call.1} parent=31 // pred_check
          %p178 = pneg %p81
        $region38: #{tpu_custom_call.1} parent=31 // pred_check_branch
          %180 = sbr.rel (%p178) target = $region40
        $region39: #{tpu_custom_call.1} parent=31 // pred_region
          %181 = dma.done %s174, 20480
        $region40: #{tpu_custom_call.1} parent=31 // pred_fallthru
          _
        %p182 = pneg %p34
        %p183 = pneg %p31
        %p184 = pneg %p55
        %p185 = pneg %p52
        %s186 = sand.u32 %s68, 1
        %s187 = scalar_lea.sflag [#allocation5], %s186
        %s188 = sand.u32 %s68, 1
        %s189 = smul.addr %s188, 1280
        %s190 = scalar_lea.vmem [#allocation4], %s189
        %p191 = pneg %p81
        %p192 = pneg %p78
        %p193 = pneg %p107
        %p194 = pneg %p104
        %s195 = smul.u32 80, %s18
        %p196 = scmp.lt.s32.totalorder %s195, 159
        %s197 = scalar_select %p196, %s195, 159
        %s198 = smul.addr %s197, 8
        %s199 = scalar_lea.vmem %s3, %s198
        %s200 = smul.u32 80, %s18
        %s201 = smul.u32 80, %s18
        %p202 = scmp.lt.s32.totalorder %s201, 159
        %s203 = scalar_select %p202, %s201, 159
        %s204 = smul.addr %s203, 8
        %s205 = scalar_lea.vmem %s3, %s204
        %s206 = smul.u32 80, %s18
        %v208 = vld [vmem:[%s177] sm:$0xff]
        %v209 = vld [vmem:[%s177 + $0x8] sm:$0xff]
        %v210 = vld [vmem:[%s177 + $0x10] sm:$0xff]
        %v211 = vld [vmem:[%s177 + $0x18] sm:$0xff]
        %v212 = vld [vmem:[%s177 + $0x20] sm:$0xff]
        %v213 = vld [vmem:[%s177 + $0x28] sm:$0xff]
        %v214 = vld [vmem:[%s177 + $0x30] sm:$0xff]
        %v215 = vld [vmem:[%s177 + $0x38] sm:$0xff]
        %v216 = vld [vmem:[%s177 + $0x40] sm:$0xff]
        %v217 = vld [vmem:[%s177 + $0x48] sm:$0xff]
        %v218 = vld [vmem:[%s177 + $0x50] sm:$0xff]
        %v219 = vld [vmem:[%s177 + $0x58] sm:$0xff]
        %v220 = vld [vmem:[%s177 + $0x60] sm:$0xff]
        %v221 = vld [vmem:[%s177 + $0x68] sm:$0xff]
        %v222 = vld [vmem:[%s177 + $0x70] sm:$0xff]
        %v223 = vld [vmem:[%s177 + $0x78] sm:$0xff]
        %v224 = vld [vmem:[%s177 + $0x80] sm:$0xff]
        %v225 = vld [vmem:[%s177 + $0x88] sm:$0xff]
        %v226 = vld [vmem:[%s177 + $0x90] sm:$0xff]
        %v227 = vld [vmem:[%s177 + $0x98] sm:$0xff]
        %v228 = vld [vmem:[%s177 + $0xa0] sm:$0xff]
        %v229 = vld [vmem:[%s177 + $0xa8] sm:$0xff]
        %v230 = vld [vmem:[%s177 + $0xb0] sm:$0xff]
        %v231 = vld [vmem:[%s177 + $0xb8] sm:$0xff]
        %v232 = vld [vmem:[%s177 + $0xc0] sm:$0xff]
        %v233 = vld [vmem:[%s177 + $0xc8] sm:$0xff]
        %v234 = vld [vmem:[%s177 + $0xd0] sm:$0xff]
        %v235 = vld [vmem:[%s177 + $0xd8] sm:$0xff]
        %v236 = vld [vmem:[%s177 + $0xe0] sm:$0xff]
        %v237 = vld [vmem:[%s177 + $0xe8] sm:$0xff]
        %v238 = vld [vmem:[%s177 + $0xf0] sm:$0xff]
        %v239 = vld [vmem:[%s177 + $0xf8] sm:$0xff]
        %v240 = vld [vmem:[%s177 + $0x100] sm:$0xff]
        %v241 = vld [vmem:[%s177 + $0x108] sm:$0xff]
        %v242 = vld [vmem:[%s177 + $0x110] sm:$0xff]
        %v243 = vld [vmem:[%s177 + $0x118] sm:$0xff]
        %v244 = vld [vmem:[%s177 + $0x120] sm:$0xff]
        %v245 = vld [vmem:[%s177 + $0x128] sm:$0xff]
        %v246 = vld [vmem:[%s177 + $0x130] sm:$0xff]
        %v247 = vld [vmem:[%s177 + $0x138] sm:$0xff]
        %v248 = vld [vmem:[%s177 + $0x140] sm:$0xff]
        %v249 = vld [vmem:[%s177 + $0x148] sm:$0xff]
        %v250 = vld [vmem:[%s177 + $0x150] sm:$0xff]
        %v251 = vld [vmem:[%s177 + $0x158] sm:$0xff]
        %v252 = vld [vmem:[%s177 + $0x160] sm:$0xff]
        %v253 = vld [vmem:[%s177 + $0x168] sm:$0xff]
        %v254 = vld [vmem:[%s177 + $0x170] sm:$0xff]
        %v255 = vld [vmem:[%s177 + $0x178] sm:$0xff]
        %v256 = vld [vmem:[%s177 + $0x180] sm:$0xff]
        %v257 = vld [vmem:[%s177 + $0x188] sm:$0xff]
        %v258 = vld [vmem:[%s177 + $0x190] sm:$0xff]
        %v259 = vld [vmem:[%s177 + $0x198] sm:$0xff]
        %v260 = vld [vmem:[%s177 + $0x1a0] sm:$0xff]
        %v261 = vld [vmem:[%s177 + $0x1a8] sm:$0xff]
        %v262 = vld [vmem:[%s177 + $0x1b0] sm:$0xff]
        %v263 = vld [vmem:[%s177 + $0x1b8] sm:$0xff]
        %v264 = vld [vmem:[%s177 + $0x1c0] sm:$0xff]
        %v265 = vld [vmem:[%s177 + $0x1c8] sm:$0xff]
        %v266 = vld [vmem:[%s177 + $0x1d0] sm:$0xff]
        %v267 = vld [vmem:[%s177 + $0x1d8] sm:$0xff]
        %v268 = vld [vmem:[%s177 + $0x1e0] sm:$0xff]
        %v269 = vld [vmem:[%s177 + $0x1e8] sm:$0xff]
        %v270 = vld [vmem:[%s177 + $0x1f0] sm:$0xff]
        %v271 = vld [vmem:[%s177 + $0x1f8] sm:$0xff]
        %v272 = vld [vmem:[%s177 + $0x200] sm:$0xff]
        %v273 = vld [vmem:[%s177 + $0x208] sm:$0xff]
        %v274 = vld [vmem:[%s177 + $0x210] sm:$0xff]
        %v275 = vld [vmem:[%s177 + $0x218] sm:$0xff]
        %v276 = vld [vmem:[%s177 + $0x220] sm:$0xff]
        %v277 = vld [vmem:[%s177 + $0x228] sm:$0xff]
        %v278 = vld [vmem:[%s177 + $0x230] sm:$0xff]
        %v279 = vld [vmem:[%s177 + $0x238] sm:$0xff]
        %v280 = vld [vmem:[%s177 + $0x240] sm:$0xff]
        %v281 = vld [vmem:[%s177 + $0x248] sm:$0xff]
        %v282 = vld [vmem:[%s177 + $0x250] sm:$0xff]
        %v283 = vld [vmem:[%s177 + $0x258] sm:$0xff]
        %v284 = vld [vmem:[%s177 + $0x260] sm:$0xff]
        %v285 = vld [vmem:[%s177 + $0x268] sm:$0xff]
        %v286 = vld [vmem:[%s177 + $0x270] sm:$0xff]
        %v287 = vld [vmem:[%s177 + $0x278] sm:$0xff]
        %v288 = vld [vmem:[%s177 + $0x280] sm:$0xff]
        %v289 = vld [vmem:[%s177 + $0x288] sm:$0xff]
        %v290 = vld [vmem:[%s177 + $0x290] sm:$0xff]
        %v291 = vld [vmem:[%s177 + $0x298] sm:$0xff]
        %v292 = vld [vmem:[%s177 + $0x2a0] sm:$0xff]
        %v293 = vld [vmem:[%s177 + $0x2a8] sm:$0xff]
        %v294 = vld [vmem:[%s177 + $0x2b0] sm:$0xff]
        %v295 = vld [vmem:[%s177 + $0x2b8] sm:$0xff]
        %v296 = vld [vmem:[%s177 + $0x2c0] sm:$0xff]
        %v297 = vld [vmem:[%s177 + $0x2c8] sm:$0xff]
        %v298 = vld [vmem:[%s177 + $0x2d0] sm:$0xff]
        %v299 = vld [vmem:[%s177 + $0x2d8] sm:$0xff]
        %v300 = vld [vmem:[%s177 + $0x2e0] sm:$0xff]
        %v301 = vld [vmem:[%s177 + $0x2e8] sm:$0xff]
        %v302 = vld [vmem:[%s177 + $0x2f0] sm:$0xff]
        %v303 = vld [vmem:[%s177 + $0x2f8] sm:$0xff]
        %v304 = vld [vmem:[%s177 + $0x300] sm:$0xff]
        %v305 = vld [vmem:[%s177 + $0x308] sm:$0xff]
        %v306 = vld [vmem:[%s177 + $0x310] sm:$0xff]
        %v307 = vld [vmem:[%s177 + $0x318] sm:$0xff]
        %v308 = vld [vmem:[%s177 + $0x320] sm:$0xff]
        %v309 = vld [vmem:[%s177 + $0x328] sm:$0xff]
        %v310 = vld [vmem:[%s177 + $0x330] sm:$0xff]
        %v311 = vld [vmem:[%s177 + $0x338] sm:$0xff]
        %v312 = vld [vmem:[%s177 + $0x340] sm:$0xff]
        %v313 = vld [vmem:[%s177 + $0x348] sm:$0xff]
        %v314 = vld [vmem:[%s177 + $0x350] sm:$0xff]
        %v315 = vld [vmem:[%s177 + $0x358] sm:$0xff]
        %v316 = vld [vmem:[%s177 + $0x360] sm:$0xff]
        %v317 = vld [vmem:[%s177 + $0x368] sm:$0xff]
        %v318 = vld [vmem:[%s177 + $0x370] sm:$0xff]
        %v319 = vld [vmem:[%s177 + $0x378] sm:$0xff]
        %v320 = vld [vmem:[%s177 + $0x380] sm:$0xff]
        %v321 = vld [vmem:[%s177 + $0x388] sm:$0xff]
        %v322 = vld [vmem:[%s177 + $0x390] sm:$0xff]
        %v323 = vld [vmem:[%s177 + $0x398] sm:$0xff]
        %v324 = vld [vmem:[%s177 + $0x3a0] sm:$0xff]
        %v325 = vld [vmem:[%s177 + $0x3a8] sm:$0xff]
        %v326 = vld [vmem:[%s177 + $0x3b0] sm:$0xff]
        %v327 = vld [vmem:[%s177 + $0x3b8] sm:$0xff]
        %v328 = vld [vmem:[%s177 + $0x3c0] sm:$0xff]
        %v329 = vld [vmem:[%s177 + $0x3c8] sm:$0xff]
        %v330 = vld [vmem:[%s177 + $0x3d0] sm:$0xff]
        %v331 = vld [vmem:[%s177 + $0x3d8] sm:$0xff]
        %v332 = vld [vmem:[%s177 + $0x3e0] sm:$0xff]
        %v333 = vld [vmem:[%s177 + $0x3e8] sm:$0xff]
        %v334 = vld [vmem:[%s177 + $0x3f0] sm:$0xff]
        %v335 = vld [vmem:[%s177 + $0x3f8] sm:$0xff]
        %v336 = vld [vmem:[%s177 + $0x400] sm:$0xff]
        %v337 = vld [vmem:[%s177 + $0x408] sm:$0xff]
        %v338 = vld [vmem:[%s177 + $0x410] sm:$0xff]
        %v339 = vld [vmem:[%s177 + $0x418] sm:$0xff]
        %v340 = vld [vmem:[%s177 + $0x420] sm:$0xff]
        %v341 = vld [vmem:[%s177 + $0x428] sm:$0xff]
        %v342 = vld [vmem:[%s177 + $0x430] sm:$0xff]
        %v343 = vld [vmem:[%s177 + $0x438] sm:$0xff]
        %v344 = vld [vmem:[%s177 + $0x440] sm:$0xff]
        %v345 = vld [vmem:[%s177 + $0x448] sm:$0xff]
        %v346 = vld [vmem:[%s177 + $0x450] sm:$0xff]
        %v347 = vld [vmem:[%s177 + $0x458] sm:$0xff]
        %v348 = vld [vmem:[%s177 + $0x460] sm:$0xff]
        %v349 = vld [vmem:[%s177 + $0x468] sm:$0xff]
        %v350 = vld [vmem:[%s177 + $0x470] sm:$0xff]
        %v351 = vld [vmem:[%s177 + $0x478] sm:$0xff]
        %v352 = vld [vmem:[%s177 + $0x480] sm:$0xff]
        %v353 = vld [vmem:[%s177 + $0x488] sm:$0xff]
        %v354 = vld [vmem:[%s177 + $0x490] sm:$0xff]
        %v355 = vld [vmem:[%s177 + $0x498] sm:$0xff]
        %v356 = vld [vmem:[%s177 + $0x4a0] sm:$0xff]
        %v357 = vld [vmem:[%s177 + $0x4a8] sm:$0xff]
        %v358 = vld [vmem:[%s177 + $0x4b0] sm:$0xff]
        %v359 = vld [vmem:[%s177 + $0x4b8] sm:$0xff]
        %v360 = vld [vmem:[%s177 + $0x4c0] sm:$0xff]
        %v361 = vld [vmem:[%s177 + $0x4c8] sm:$0xff]
        %v362 = vld [vmem:[%s177 + $0x4d0] sm:$0xff]
        %v363 = vld [vmem:[%s177 + $0x4d8] sm:$0xff]
        %v364 = vld [vmem:[%s177 + $0x4e0] sm:$0xff]
        %v365 = vld [vmem:[%s177 + $0x4e8] sm:$0xff]
        %v366 = vld [vmem:[%s177 + $0x4f0] sm:$0xff]
        %v367 = vld [vmem:[%s177 + $0x4f8] sm:$0xff]
        %v368 = vld [vmem:[%s0] sm:$0xf]
        %v369 = vld [vmem:[%s0 + $0x4] sm:$0xf]
        %v370 = vld [vmem:[%s0 + $0x8] sm:$0xf]
        %v371 = vld [vmem:[%s0 + $0xc] sm:$0xf]
        %v372 = vld [vmem:[%s0 + $0x10] sm:$0xf]
        %v373 = vld [vmem:[%s0 + $0x14] sm:$0xf]
        %v374 = vld [vmem:[%s0 + $0x18] sm:$0xf]
        %v375 = vld [vmem:[%s0 + $0x1c] sm:$0xf]
        %v376 = vld [vmem:[%s0 + $0x20] sm:$0xf]
        %v377 = vld [vmem:[%s0 + $0x24] sm:$0xf]
        %v378 = vld [vmem:[%s0 + $0x28] sm:$0xf]
        %v379 = vld [vmem:[%s0 + $0x2c] sm:$0xf]
        %v380 = vld [vmem:[%s0 + $0x30] sm:$0xf]
        %v381 = vld [vmem:[%s0 + $0x34] sm:$0xf]
        %v382 = vld [vmem:[%s0 + $0x38] sm:$0xf]
        %v383 = vld [vmem:[%s0 + $0x3c] sm:$0xf]
        %v384 = vld [vmem:[%s0 + $0x40] sm:$0xf]
        %v385 = vld [vmem:[%s0 + $0x44] sm:$0xf]
        %v386 = vld [vmem:[%s0 + $0x48] sm:$0xf]
        %v387 = vld [vmem:[%s0 + $0x4c] sm:$0xf]
        %v388 = vld [vmem:[%s0 + $0x50] sm:$0xf]
        %v389 = vld [vmem:[%s0 + $0x54] sm:$0xf]
        %v390 = vld [vmem:[%s0 + $0x58] sm:$0xf]
        %v391 = vld [vmem:[%s0 + $0x5c] sm:$0xf]
        %v392 = vld [vmem:[%s0 + $0x60] sm:$0xf]
        %v393 = vld [vmem:[%s0 + $0x64] sm:$0xf]
        %v394 = vld [vmem:[%s0 + $0x68] sm:$0xf]
        %v395 = vld [vmem:[%s0 + $0x6c] sm:$0xf]
        %v396 = vld [vmem:[%s0 + $0x70] sm:$0xf]
        %v397 = vld [vmem:[%s0 + $0x74] sm:$0xf]
        %v398 = vld [vmem:[%s0 + $0x78] sm:$0xf]
        %v399 = vld [vmem:[%s0 + $0x7c] sm:$0xf]
        %v400 = vld [vmem:[%s0 + $0x80] sm:$0xf]
        %v401 = vld [vmem:[%s0 + $0x84] sm:$0xf]
        %v402 = vld [vmem:[%s0 + $0x88] sm:$0xf]
        %v403 = vld [vmem:[%s0 + $0x8c] sm:$0xf]
        %v404 = vld [vmem:[%s0 + $0x90] sm:$0xf]
        %v405 = vld [vmem:[%s0 + $0x94] sm:$0xf]
        %v406 = vld [vmem:[%s0 + $0x98] sm:$0xf]
        %v407 = vld [vmem:[%s0 + $0x9c] sm:$0xf]
        %v408 = vld [vmem:[%s0 + $0xa0] sm:$0xf]
        %v409 = vld [vmem:[%s0 + $0xa4] sm:$0xf]
        %v410 = vld [vmem:[%s0 + $0xa8] sm:$0xf]
        %v411 = vld [vmem:[%s0 + $0xac] sm:$0xf]
        %v412 = vld [vmem:[%s0 + $0xb0] sm:$0xf]
        %v413 = vld [vmem:[%s0 + $0xb4] sm:$0xf]
        %v414 = vld [vmem:[%s0 + $0xb8] sm:$0xf]
        %v415 = vld [vmem:[%s0 + $0xbc] sm:$0xf]
        %v416 = vld [vmem:[%s0 + $0xc0] sm:$0xf]
        %v417 = vld [vmem:[%s0 + $0xc4] sm:$0xf]
        %v418 = vld [vmem:[%s0 + $0xc8] sm:$0xf]
        %v419 = vld [vmem:[%s0 + $0xcc] sm:$0xf]
        %v420 = vld [vmem:[%s0 + $0xd0] sm:$0xf]
        %v421 = vld [vmem:[%s0 + $0xd4] sm:$0xf]
        %v422 = vld [vmem:[%s0 + $0xd8] sm:$0xf]
        %v423 = vld [vmem:[%s0 + $0xdc] sm:$0xf]
        %v424 = vld [vmem:[%s0 + $0xe0] sm:$0xf]
        %v425 = vld [vmem:[%s0 + $0xe4] sm:$0xf]
        %v426 = vld [vmem:[%s0 + $0xe8] sm:$0xf]
        %v427 = vld [vmem:[%s0 + $0xec] sm:$0xf]
        %v428 = vld [vmem:[%s0 + $0xf0] sm:$0xf]
        %v429 = vld [vmem:[%s0 + $0xf4] sm:$0xf]
        %v430 = vld [vmem:[%s0 + $0xf8] sm:$0xf]
        %v431 = vld [vmem:[%s0 + $0xfc] sm:$0xf]
        %v432 = vld [vmem:[#allocation2] sm:$0x1]
        %v434 = vlaneseq
        %v435 = vshrl.u32 %v434, 7
        %v436 = vsub.s32 0, %v435
        %v437 = vrot.slane %v432, %v436
        %v599 = vunpack.c.l.b16 %v208
        %v600 = vunpack.c.h.b16 %v208
        %v601 = vunpack.c.l.b16 %v209
        %v602 = vunpack.c.h.b16 %v209
        %v603 = vunpack.c.l.b16 %v210
        %v604 = vunpack.c.h.b16 %v210
        %v605 = vunpack.c.l.b16 %v211
        %v606 = vunpack.c.h.b16 %v211
        %v607 = vunpack.c.l.b16 %v212
        %v608 = vunpack.c.h.b16 %v212
        %v609 = vunpack.c.l.b16 %v213
        %v610 = vunpack.c.h.b16 %v213
        %v611 = vunpack.c.l.b16 %v214
        %v612 = vunpack.c.h.b16 %v214
        %v613 = vunpack.c.l.b16 %v215
        %v614 = vunpack.c.h.b16 %v215
        %v615 = vunpack.c.l.b16 %v216
        %v616 = vunpack.c.h.b16 %v216
        %v617 = vunpack.c.l.b16 %v217
        %v618 = vunpack.c.h.b16 %v217
        %v619 = vunpack.c.l.b16 %v218
        %v620 = vunpack.c.h.b16 %v218
        %v621 = vunpack.c.l.b16 %v219
        %v622 = vunpack.c.h.b16 %v219
        %v623 = vunpack.c.l.b16 %v220
        %v624 = vunpack.c.h.b16 %v220
        %v625 = vunpack.c.l.b16 %v221
        %v626 = vunpack.c.h.b16 %v221
        %v627 = vunpack.c.l.b16 %v222
        %v628 = vunpack.c.h.b16 %v222
        %v629 = vunpack.c.l.b16 %v223
        %v630 = vunpack.c.h.b16 %v223
        %v631 = vunpack.c.l.b16 %v224
        %v632 = vunpack.c.h.b16 %v224
        %v633 = vunpack.c.l.b16 %v225
        %v634 = vunpack.c.h.b16 %v225
        %v635 = vunpack.c.l.b16 %v226
        %v636 = vunpack.c.h.b16 %v226
        %v637 = vunpack.c.l.b16 %v227
        %v638 = vunpack.c.h.b16 %v227
        %v639 = vunpack.c.l.b16 %v228
        %v640 = vunpack.c.h.b16 %v228
        %v641 = vunpack.c.l.b16 %v229
        %v642 = vunpack.c.h.b16 %v229
        %v643 = vunpack.c.l.b16 %v230
        %v644 = vunpack.c.h.b16 %v230
        %v645 = vunpack.c.l.b16 %v231
        %v646 = vunpack.c.h.b16 %v231
        %v647 = vunpack.c.l.b16 %v232
        %v648 = vunpack.c.h.b16 %v232
        %v649 = vunpack.c.l.b16 %v233
        %v650 = vunpack.c.h.b16 %v233
        %v651 = vunpack.c.l.b16 %v234
        %v652 = vunpack.c.h.b16 %v234
        %v653 = vunpack.c.l.b16 %v235
        %v654 = vunpack.c.h.b16 %v235
        %v655 = vunpack.c.l.b16 %v236
        %v656 = vunpack.c.h.b16 %v236
        %v657 = vunpack.c.l.b16 %v237
        %v658 = vunpack.c.h.b16 %v237
        %v659 = vunpack.c.l.b16 %v238
        %v660 = vunpack.c.h.b16 %v238
        %v661 = vunpack.c.l.b16 %v239
        %v662 = vunpack.c.h.b16 %v239
        %v663 = vunpack.c.l.b16 %v240
        %v664 = vunpack.c.h.b16 %v240
        %v665 = vunpack.c.l.b16 %v241
        %v666 = vunpack.c.h.b16 %v241
        %v667 = vunpack.c.l.b16 %v242
        %v668 = vunpack.c.h.b16 %v242
        %v669 = vunpack.c.l.b16 %v243
        %v670 = vunpack.c.h.b16 %v243
        %v671 = vunpack.c.l.b16 %v244
        %v672 = vunpack.c.h.b16 %v244
        %v673 = vunpack.c.l.b16 %v245
        %v674 = vunpack.c.h.b16 %v245
        %v675 = vunpack.c.l.b16 %v246
        %v676 = vunpack.c.h.b16 %v246
        %v677 = vunpack.c.l.b16 %v247
        %v678 = vunpack.c.h.b16 %v247
        %v679 = vunpack.c.l.b16 %v248
        %v680 = vunpack.c.h.b16 %v248
        %v681 = vunpack.c.l.b16 %v249
        %v682 = vunpack.c.h.b16 %v249
        %v683 = vunpack.c.l.b16 %v250
        %v684 = vunpack.c.h.b16 %v250
        %v685 = vunpack.c.l.b16 %v251
        %v686 = vunpack.c.h.b16 %v251
        %v687 = vunpack.c.l.b16 %v252
        %v688 = vunpack.c.h.b16 %v252
        %v689 = vunpack.c.l.b16 %v253
        %v690 = vunpack.c.h.b16 %v253
        %v691 = vunpack.c.l.b16 %v254
        %v692 = vunpack.c.h.b16 %v254
        %v693 = vunpack.c.l.b16 %v255
        %v694 = vunpack.c.h.b16 %v255
        %v695 = vunpack.c.l.b16 %v256
        %v696 = vunpack.c.h.b16 %v256
        %v697 = vunpack.c.l.b16 %v257
        %v698 = vunpack.c.h.b16 %v257
        %v699 = vunpack.c.l.b16 %v258
        %v700 = vunpack.c.h.b16 %v258
        %v701 = vunpack.c.l.b16 %v259
        %v702 = vunpack.c.h.b16 %v259
        %v703 = vunpack.c.l.b16 %v260
        %v704 = vunpack.c.h.b16 %v260
        %v705 = vunpack.c.l.b16 %v261
        %v706 = vunpack.c.h.b16 %v261
        %v707 = vunpack.c.l.b16 %v262
        %v708 = vunpack.c.h.b16 %v262
        %v709 = vunpack.c.l.b16 %v263
        %v710 = vunpack.c.h.b16 %v263
        %v711 = vunpack.c.l.b16 %v264
        %v712 = vunpack.c.h.b16 %v264
        %v713 = vunpack.c.l.b16 %v265
        %v714 = vunpack.c.h.b16 %v265
        %v715 = vunpack.c.l.b16 %v266
        %v716 = vunpack.c.h.b16 %v266
        %v717 = vunpack.c.l.b16 %v267
        %v718 = vunpack.c.h.b16 %v267
        %v719 = vunpack.c.l.b16 %v268
        %v720 = vunpack.c.h.b16 %v268
        %v721 = vunpack.c.l.b16 %v269
        %v722 = vunpack.c.h.b16 %v269
        %v723 = vunpack.c.l.b16 %v270
        %v724 = vunpack.c.h.b16 %v270
        %v725 = vunpack.c.l.b16 %v271
        %v726 = vunpack.c.h.b16 %v271
        %v727 = vunpack.c.l.b16 %v272
        %v728 = vunpack.c.h.b16 %v272
        %v729 = vunpack.c.l.b16 %v273
        %v730 = vunpack.c.h.b16 %v273
        %v731 = vunpack.c.l.b16 %v274
        %v732 = vunpack.c.h.b16 %v274
        %v733 = vunpack.c.l.b16 %v275
        %v734 = vunpack.c.h.b16 %v275
        %v735 = vunpack.c.l.b16 %v276
        %v736 = vunpack.c.h.b16 %v276
        %v737 = vunpack.c.l.b16 %v277
        %v738 = vunpack.c.h.b16 %v277
        %v739 = vunpack.c.l.b16 %v278
        %v740 = vunpack.c.h.b16 %v278
        %v741 = vunpack.c.l.b16 %v279
        %v742 = vunpack.c.h.b16 %v279
        %v743 = vunpack.c.l.b16 %v280
        %v744 = vunpack.c.h.b16 %v280
        %v745 = vunpack.c.l.b16 %v281
        %v746 = vunpack.c.h.b16 %v281
        %v747 = vunpack.c.l.b16 %v282
        %v748 = vunpack.c.h.b16 %v282
        %v749 = vunpack.c.l.b16 %v283
        %v750 = vunpack.c.h.b16 %v283
        %v751 = vunpack.c.l.b16 %v284
        %v752 = vunpack.c.h.b16 %v284
        %v753 = vunpack.c.l.b16 %v285
        %v754 = vunpack.c.h.b16 %v285
        %v755 = vunpack.c.l.b16 %v286
        %v756 = vunpack.c.h.b16 %v286
        %v757 = vunpack.c.l.b16 %v287
        %v758 = vunpack.c.h.b16 %v287
        %v759 = vunpack.c.l.b16 %v288
        %v760 = vunpack.c.h.b16 %v288
        %v761 = vunpack.c.l.b16 %v289
        %v762 = vunpack.c.h.b16 %v289
        %v763 = vunpack.c.l.b16 %v290
        %v764 = vunpack.c.h.b16 %v290
        %v765 = vunpack.c.l.b16 %v291
        %v766 = vunpack.c.h.b16 %v291
        %v767 = vunpack.c.l.b16 %v292
        %v768 = vunpack.c.h.b16 %v292
        %v769 = vunpack.c.l.b16 %v293
        %v770 = vunpack.c.h.b16 %v293
        %v771 = vunpack.c.l.b16 %v294
        %v772 = vunpack.c.h.b16 %v294
        %v773 = vunpack.c.l.b16 %v295
        %v774 = vunpack.c.h.b16 %v295
        %v775 = vunpack.c.l.b16 %v296
        %v776 = vunpack.c.h.b16 %v296
        %v777 = vunpack.c.l.b16 %v297
        %v778 = vunpack.c.h.b16 %v297
        %v779 = vunpack.c.l.b16 %v298
        %v780 = vunpack.c.h.b16 %v298
        %v781 = vunpack.c.l.b16 %v299
        %v782 = vunpack.c.h.b16 %v299
        %v783 = vunpack.c.l.b16 %v300
        %v784 = vunpack.c.h.b16 %v300
        %v785 = vunpack.c.l.b16 %v301
        %v786 = vunpack.c.h.b16 %v301
        %v787 = vunpack.c.l.b16 %v302
        %v788 = vunpack.c.h.b16 %v302
        %v789 = vunpack.c.l.b16 %v303
        %v790 = vunpack.c.h.b16 %v303
        %v791 = vunpack.c.l.b16 %v304
        %v792 = vunpack.c.h.b16 %v304
        %v793 = vunpack.c.l.b16 %v305
        %v794 = vunpack.c.h.b16 %v305
        %v795 = vunpack.c.l.b16 %v306
        %v796 = vunpack.c.h.b16 %v306
        %v797 = vunpack.c.l.b16 %v307
        %v798 = vunpack.c.h.b16 %v307
        %v799 = vunpack.c.l.b16 %v308
        %v800 = vunpack.c.h.b16 %v308
        %v801 = vunpack.c.l.b16 %v309
        %v802 = vunpack.c.h.b16 %v309
        %v803 = vunpack.c.l.b16 %v310
        %v804 = vunpack.c.h.b16 %v310
        %v805 = vunpack.c.l.b16 %v311
        %v806 = vunpack.c.h.b16 %v311
        %v807 = vunpack.c.l.b16 %v312
        %v808 = vunpack.c.h.b16 %v312
        %v809 = vunpack.c.l.b16 %v313
        %v810 = vunpack.c.h.b16 %v313
        %v811 = vunpack.c.l.b16 %v314
        %v812 = vunpack.c.h.b16 %v314
        %v813 = vunpack.c.l.b16 %v315
        %v814 = vunpack.c.h.b16 %v315
        %v815 = vunpack.c.l.b16 %v316
        %v816 = vunpack.c.h.b16 %v316
        %v817 = vunpack.c.l.b16 %v317
        %v818 = vunpack.c.h.b16 %v317
        %v819 = vunpack.c.l.b16 %v318
        %v820 = vunpack.c.h.b16 %v318
        %v821 = vunpack.c.l.b16 %v319
        %v822 = vunpack.c.h.b16 %v319
        %v823 = vunpack.c.l.b16 %v320
        %v824 = vunpack.c.h.b16 %v320
        %v825 = vunpack.c.l.b16 %v321
        %v826 = vunpack.c.h.b16 %v321
        %v827 = vunpack.c.l.b16 %v322
        %v828 = vunpack.c.h.b16 %v322
        %v829 = vunpack.c.l.b16 %v323
        %v830 = vunpack.c.h.b16 %v323
        %v831 = vunpack.c.l.b16 %v324
        %v832 = vunpack.c.h.b16 %v324
        %v833 = vunpack.c.l.b16 %v325
        %v834 = vunpack.c.h.b16 %v325
        %v835 = vunpack.c.l.b16 %v326
        %v836 = vunpack.c.h.b16 %v326
        %v837 = vunpack.c.l.b16 %v327
        %v838 = vunpack.c.h.b16 %v327
        %v839 = vunpack.c.l.b16 %v328
        %v840 = vunpack.c.h.b16 %v328
        %v841 = vunpack.c.l.b16 %v329
        %v842 = vunpack.c.h.b16 %v329
        %v843 = vunpack.c.l.b16 %v330
        %v844 = vunpack.c.h.b16 %v330
        %v845 = vunpack.c.l.b16 %v331
        %v846 = vunpack.c.h.b16 %v331
        %v847 = vunpack.c.l.b16 %v332
        %v848 = vunpack.c.h.b16 %v332
        %v849 = vunpack.c.l.b16 %v333
        %v850 = vunpack.c.h.b16 %v333
        %v851 = vunpack.c.l.b16 %v334
        %v852 = vunpack.c.h.b16 %v334
        %v853 = vunpack.c.l.b16 %v335
        %v854 = vunpack.c.h.b16 %v335
        %v855 = vunpack.c.l.b16 %v336
        %v856 = vunpack.c.h.b16 %v336
        %v857 = vunpack.c.l.b16 %v337
        %v858 = vunpack.c.h.b16 %v337
        %v859 = vunpack.c.l.b16 %v338
        %v860 = vunpack.c.h.b16 %v338
        %v861 = vunpack.c.l.b16 %v339
        %v862 = vunpack.c.h.b16 %v339
        %v863 = vunpack.c.l.b16 %v340
        %v864 = vunpack.c.h.b16 %v340
        %v865 = vunpack.c.l.b16 %v341
        %v866 = vunpack.c.h.b16 %v341
        %v867 = vunpack.c.l.b16 %v342
        %v868 = vunpack.c.h.b16 %v342
        %v869 = vunpack.c.l.b16 %v343
        %v870 = vunpack.c.h.b16 %v343
        %v871 = vunpack.c.l.b16 %v344
        %v872 = vunpack.c.h.b16 %v344
        %v873 = vunpack.c.l.b16 %v345
        %v874 = vunpack.c.h.b16 %v345
        %v875 = vunpack.c.l.b16 %v346
        %v876 = vunpack.c.h.b16 %v346
        %v877 = vunpack.c.l.b16 %v347
        %v878 = vunpack.c.h.b16 %v347
        %v879 = vunpack.c.l.b16 %v348
        %v880 = vunpack.c.h.b16 %v348
        %v881 = vunpack.c.l.b16 %v349
        %v882 = vunpack.c.h.b16 %v349
        %v883 = vunpack.c.l.b16 %v350
        %v884 = vunpack.c.h.b16 %v350
        %v885 = vunpack.c.l.b16 %v351
        %v886 = vunpack.c.h.b16 %v351
        %v887 = vunpack.c.l.b16 %v352
        %v888 = vunpack.c.h.b16 %v352
        %v889 = vunpack.c.l.b16 %v353
        %v890 = vunpack.c.h.b16 %v353
        %v891 = vunpack.c.l.b16 %v354
        %v892 = vunpack.c.h.b16 %v354
        %v893 = vunpack.c.l.b16 %v355
        %v894 = vunpack.c.h.b16 %v355
        %v895 = vunpack.c.l.b16 %v356
        %v896 = vunpack.c.h.b16 %v356
        %v897 = vunpack.c.l.b16 %v357
        %v898 = vunpack.c.h.b16 %v357
        %v899 = vunpack.c.l.b16 %v358
        %v900 = vunpack.c.h.b16 %v358
        %v901 = vunpack.c.l.b16 %v359
        %v902 = vunpack.c.h.b16 %v359
        %v903 = vunpack.c.l.b16 %v360
        %v904 = vunpack.c.h.b16 %v360
        %v905 = vunpack.c.l.b16 %v361
        %v906 = vunpack.c.h.b16 %v361
        %v907 = vunpack.c.l.b16 %v362
        %v908 = vunpack.c.h.b16 %v362
        %v909 = vunpack.c.l.b16 %v363
        %v910 = vunpack.c.h.b16 %v363
        %v911 = vunpack.c.l.b16 %v364
        %v912 = vunpack.c.h.b16 %v364
        %v913 = vunpack.c.l.b16 %v365
        %v914 = vunpack.c.h.b16 %v365
        %v915 = vunpack.c.l.b16 %v366
        %v916 = vunpack.c.h.b16 %v366
        %v917 = vunpack.c.l.b16 %v367
        %v918 = vunpack.c.h.b16 %v367
        %v919 = vpack.c.b16 %v603, %v599
        %v920 = vpack.c.b16 %v604, %v600
        %v921 = vpack.c.b16 %v605, %v601
        %v922 = vpack.c.b16 %v606, %v602
        %v923 = vpack.c.b16 %v611, %v607
        %v924 = vpack.c.b16 %v612, %v608
        %v925 = vpack.c.b16 %v613, %v609
        %v926 = vpack.c.b16 %v614, %v610
        %v927 = vpack.c.b16 %v619, %v615
        %v928 = vpack.c.b16 %v620, %v616
        %v929 = vpack.c.b16 %v621, %v617
        %v930 = vpack.c.b16 %v622, %v618
        %v931 = vpack.c.b16 %v627, %v623
        %v932 = vpack.c.b16 %v628, %v624
        %v933 = vpack.c.b16 %v629, %v625
        %v934 = vpack.c.b16 %v630, %v626
        %v935 = vpack.c.b16 %v635, %v631
        %v936 = vpack.c.b16 %v636, %v632
        %v937 = vpack.c.b16 %v637, %v633
        %v938 = vpack.c.b16 %v638, %v634
        %v939 = vpack.c.b16 %v643, %v639
        %v940 = vpack.c.b16 %v644, %v640
        %v941 = vpack.c.b16 %v645, %v641
        %v942 = vpack.c.b16 %v646, %v642
        %v943 = vpack.c.b16 %v651, %v647
        %v944 = vpack.c.b16 %v652, %v648
        %v945 = vpack.c.b16 %v653, %v649
        %v946 = vpack.c.b16 %v654, %v650
        %v947 = vpack.c.b16 %v659, %v655
        %v948 = vpack.c.b16 %v660, %v656
        %v949 = vpack.c.b16 %v661, %v657
        %v950 = vpack.c.b16 %v662, %v658
        %v951 = vpack.c.b16 %v667, %v663
        %v952 = vpack.c.b16 %v668, %v664
        %v953 = vpack.c.b16 %v669, %v665
        %v954 = vpack.c.b16 %v670, %v666
        %v955 = vpack.c.b16 %v675, %v671
        %v956 = vpack.c.b16 %v676, %v672
        %v957 = vpack.c.b16 %v677, %v673
        %v958 = vpack.c.b16 %v678, %v674
        %v959 = vpack.c.b16 %v683, %v679
        %v960 = vpack.c.b16 %v684, %v680
        %v961 = vpack.c.b16 %v685, %v681
        %v962 = vpack.c.b16 %v686, %v682
        %v963 = vpack.c.b16 %v691, %v687
        %v964 = vpack.c.b16 %v692, %v688
        %v965 = vpack.c.b16 %v693, %v689
        %v966 = vpack.c.b16 %v694, %v690
        %v967 = vpack.c.b16 %v699, %v695
        %v968 = vpack.c.b16 %v700, %v696
        %v969 = vpack.c.b16 %v701, %v697
        %v970 = vpack.c.b16 %v702, %v698
        %v971 = vpack.c.b16 %v707, %v703
        %v972 = vpack.c.b16 %v708, %v704
        %v973 = vpack.c.b16 %v709, %v705
        %v974 = vpack.c.b16 %v710, %v706
        %v975 = vpack.c.b16 %v715, %v711
        %v976 = vpack.c.b16 %v716, %v712
        %v977 = vpack.c.b16 %v717, %v713
        %v978 = vpack.c.b16 %v718, %v714
        %v979 = vpack.c.b16 %v723, %v719
        %v980 = vpack.c.b16 %v724, %v720
        %v981 = vpack.c.b16 %v725, %v721
        %v982 = vpack.c.b16 %v726, %v722
        %v983 = vpack.c.b16 %v731, %v727
        %v984 = vpack.c.b16 %v732, %v728
        %v985 = vpack.c.b16 %v733, %v729
        %v986 = vpack.c.b16 %v734, %v730
        %v987 = vpack.c.b16 %v739, %v735
        %v988 = vpack.c.b16 %v740, %v736
        %v989 = vpack.c.b16 %v741, %v737
        %v990 = vpack.c.b16 %v742, %v738
        %v991 = vpack.c.b16 %v747, %v743
        %v992 = vpack.c.b16 %v748, %v744
        %v993 = vpack.c.b16 %v749, %v745
        %v994 = vpack.c.b16 %v750, %v746
        %v995 = vpack.c.b16 %v755, %v751
        %v996 = vpack.c.b16 %v756, %v752
        %v997 = vpack.c.b16 %v757, %v753
        %v998 = vpack.c.b16 %v758, %v754
        %v999 = vpack.c.b16 %v763, %v759
        %v1000 = vpack.c.b16 %v764, %v760
        %v1001 = vpack.c.b16 %v765, %v761
        %v1002 = vpack.c.b16 %v766, %v762
        %v1003 = vpack.c.b16 %v771, %v767
        %v1004 = vpack.c.b16 %v772, %v768
        %v1005 = vpack.c.b16 %v773, %v769
        %v1006 = vpack.c.b16 %v774, %v770
        %v1007 = vpack.c.b16 %v779, %v775
        %v1008 = vpack.c.b16 %v780, %v776
        %v1009 = vpack.c.b16 %v781, %v777
        %v1010 = vpack.c.b16 %v782, %v778
        %v1011 = vpack.c.b16 %v787, %v783
        %v1012 = vpack.c.b16 %v788, %v784
        %v1013 = vpack.c.b16 %v789, %v785
        %v1014 = vpack.c.b16 %v790, %v786
        %v1015 = vpack.c.b16 %v795, %v791
        %v1016 = vpack.c.b16 %v796, %v792
        %v1017 = vpack.c.b16 %v797, %v793
        %v1018 = vpack.c.b16 %v798, %v794
        %v1019 = vpack.c.b16 %v803, %v799
        %v1020 = vpack.c.b16 %v804, %v800
        %v1021 = vpack.c.b16 %v805, %v801
        %v1022 = vpack.c.b16 %v806, %v802
        %v1023 = vpack.c.b16 %v811, %v807
        %v1024 = vpack.c.b16 %v812, %v808
        %v1025 = vpack.c.b16 %v813, %v809
        %v1026 = vpack.c.b16 %v814, %v810
        %v1027 = vpack.c.b16 %v819, %v815
        %v1028 = vpack.c.b16 %v820, %v816
        %v1029 = vpack.c.b16 %v821, %v817
        %v1030 = vpack.c.b16 %v822, %v818
        %v1031 = vpack.c.b16 %v827, %v823
        %v1032 = vpack.c.b16 %v828, %v824
        %v1033 = vpack.c.b16 %v829, %v825
        %v1034 = vpack.c.b16 %v830, %v826
        %v1035 = vpack.c.b16 %v835, %v831
        %v1036 = vpack.c.b16 %v836, %v832
        %v1037 = vpack.c.b16 %v837, %v833
        %v1038 = vpack.c.b16 %v838, %v834
        %v1039 = vpack.c.b16 %v843, %v839
        %v1040 = vpack.c.b16 %v844, %v840
        %v1041 = vpack.c.b16 %v845, %v841
        %v1042 = vpack.c.b16 %v846, %v842
        %v1043 = vpack.c.b16 %v851, %v847
        %v1044 = vpack.c.b16 %v852, %v848
        %v1045 = vpack.c.b16 %v853, %v849
        %v1046 = vpack.c.b16 %v854, %v850
        %v1047 = vpack.c.b16 %v859, %v855
        %v1048 = vpack.c.b16 %v860, %v856
        %v1049 = vpack.c.b16 %v861, %v857
        %v1050 = vpack.c.b16 %v862, %v858
        %v1051 = vpack.c.b16 %v867, %v863
        %v1052 = vpack.c.b16 %v868, %v864
        %v1053 = vpack.c.b16 %v869, %v865
        %v1054 = vpack.c.b16 %v870, %v866
        %v1055 = vpack.c.b16 %v875, %v871
        %v1056 = vpack.c.b16 %v876, %v872
        %v1057 = vpack.c.b16 %v877, %v873
        %v1058 = vpack.c.b16 %v878, %v874
        %v1059 = vpack.c.b16 %v883, %v879
        %v1060 = vpack.c.b16 %v884, %v880
        %v1061 = vpack.c.b16 %v885, %v881
        %v1062 = vpack.c.b16 %v886, %v882
        %v1063 = vpack.c.b16 %v891, %v887
        %v1064 = vpack.c.b16 %v892, %v888
        %v1065 = vpack.c.b16 %v893, %v889
        %v1066 = vpack.c.b16 %v894, %v890
        %v1067 = vpack.c.b16 %v899, %v895
        %v1068 = vpack.c.b16 %v900, %v896
        %v1069 = vpack.c.b16 %v901, %v897
        %v1070 = vpack.c.b16 %v902, %v898
        %v1071 = vpack.c.b16 %v907, %v903
        %v1072 = vpack.c.b16 %v908, %v904
        %v1073 = vpack.c.b16 %v909, %v905
        %v1074 = vpack.c.b16 %v910, %v906
        %v1075 = vpack.c.b16 %v915, %v911
        %v1076 = vpack.c.b16 %v916, %v912
        %v1077 = vpack.c.b16 %v917, %v913
        %v1078 = vpack.c.b16 %v918, %v914
        %v1303 = vunpack.c.l.b16 %v368
        %v1304 = vunpack.c.l.b16 %v369
        %v1305 = vunpack.c.l.b16 %v370
        %v1306 = vunpack.c.l.b16 %v371
        %v1307 = vunpack.c.l.b16 %v372
        %v1308 = vunpack.c.l.b16 %v373
        %v1309 = vunpack.c.l.b16 %v374
        %v1310 = vunpack.c.l.b16 %v375
        %v1311 = vunpack.c.l.b16 %v376
        %v1312 = vunpack.c.l.b16 %v377
        %v1313 = vunpack.c.l.b16 %v378
        %v1314 = vunpack.c.l.b16 %v379
        %v1315 = vunpack.c.l.b16 %v380
        %v1316 = vunpack.c.l.b16 %v381
        %v1317 = vunpack.c.l.b16 %v382
        %v1318 = vunpack.c.l.b16 %v383
        %v1319 = vunpack.c.l.b16 %v384
        %v1320 = vunpack.c.l.b16 %v385
        %v1321 = vunpack.c.l.b16 %v386
        %v1322 = vunpack.c.l.b16 %v387
        %v1323 = vunpack.c.l.b16 %v388
        %v1324 = vunpack.c.l.b16 %v389
        %v1325 = vunpack.c.l.b16 %v390
        %v1326 = vunpack.c.l.b16 %v391
        %v1327 = vunpack.c.l.b16 %v392
        %v1328 = vunpack.c.l.b16 %v393
        %v1329 = vunpack.c.l.b16 %v394
        %v1330 = vunpack.c.l.b16 %v395
        %v1331 = vunpack.c.l.b16 %v396
        %v1332 = vunpack.c.l.b16 %v397
        %v1333 = vunpack.c.l.b16 %v398
        %v1334 = vunpack.c.l.b16 %v399
        %v1335 = vunpack.c.l.b16 %v400
        %v1336 = vunpack.c.l.b16 %v401
        %v1337 = vunpack.c.l.b16 %v402
        %v1338 = vunpack.c.l.b16 %v403
        %v1339 = vunpack.c.l.b16 %v404
        %v1340 = vunpack.c.l.b16 %v405
        %v1341 = vunpack.c.l.b16 %v406
        %v1342 = vunpack.c.l.b16 %v407
        %v1343 = vunpack.c.l.b16 %v408
        %v1344 = vunpack.c.l.b16 %v409
        %v1345 = vunpack.c.l.b16 %v410
        %v1346 = vunpack.c.l.b16 %v411
        %v1347 = vunpack.c.l.b16 %v412
        %v1348 = vunpack.c.l.b16 %v413
        %v1349 = vunpack.c.l.b16 %v414
        %v1350 = vunpack.c.l.b16 %v415
        %v1351 = vunpack.c.l.b16 %v416
        %v1352 = vunpack.c.l.b16 %v417
        %v1353 = vunpack.c.l.b16 %v418
        %v1354 = vunpack.c.l.b16 %v419
        %v1355 = vunpack.c.l.b16 %v420
        %v1356 = vunpack.c.l.b16 %v421
        %v1357 = vunpack.c.l.b16 %v422
        %v1358 = vunpack.c.l.b16 %v423
        %v1359 = vunpack.c.l.b16 %v424
        %v1360 = vunpack.c.l.b16 %v425
        %v1361 = vunpack.c.l.b16 %v426
        %v1362 = vunpack.c.l.b16 %v427
        %v1363 = vunpack.c.l.b16 %v428
        %v1364 = vunpack.c.l.b16 %v429
        %v1365 = vunpack.c.l.b16 %v430
        %v1366 = vunpack.c.l.b16 %v431
        %v1367 = vpack.c.b16 %v1304, %v1303
        %v1368 = vpack.c.b16 %v1306, %v1305
        %v1369 = vpack.c.b16 %v1308, %v1307
        %v1370 = vpack.c.b16 %v1310, %v1309
        %v1371 = vpack.c.b16 %v1312, %v1311
        %v1372 = vpack.c.b16 %v1314, %v1313
        %v1373 = vpack.c.b16 %v1316, %v1315
        %v1374 = vpack.c.b16 %v1318, %v1317
        %v1375 = vpack.c.b16 %v1320, %v1319
        %v1376 = vpack.c.b16 %v1322, %v1321
        %v1377 = vpack.c.b16 %v1324, %v1323
        %v1378 = vpack.c.b16 %v1326, %v1325
        %v1379 = vpack.c.b16 %v1328, %v1327
        %v1380 = vpack.c.b16 %v1330, %v1329
        %v1381 = vpack.c.b16 %v1332, %v1331
        %v1382 = vpack.c.b16 %v1334, %v1333
        %v1383 = vpack.c.b16 %v1336, %v1335
        %v1384 = vpack.c.b16 %v1338, %v1337
        %v1385 = vpack.c.b16 %v1340, %v1339
        %v1386 = vpack.c.b16 %v1342, %v1341
        %v1387 = vpack.c.b16 %v1344, %v1343
        %v1388 = vpack.c.b16 %v1346, %v1345
        %v1389 = vpack.c.b16 %v1348, %v1347
        %v1390 = vpack.c.b16 %v1350, %v1349
        %v1391 = vpack.c.b16 %v1352, %v1351
        %v1392 = vpack.c.b16 %v1354, %v1353
        %v1393 = vpack.c.b16 %v1356, %v1355
        %v1394 = vpack.c.b16 %v1358, %v1357
        %v1395 = vpack.c.b16 %v1360, %v1359
        %v1396 = vpack.c.b16 %v1362, %v1361
        %v1397 = vpack.c.b16 %v1364, %v1363
        %v1398 = vpack.c.b16 %v1366, %v1365
        %1431 = vmatprep.subr.bf16.mxu0 0
        %1432 = vmatpush1.bf16.msra.mxu0 %v1367
        %1433 = vmatprep.subr.bf16.mxu0 0
        %1434 = vmatpush1.bf16.msra.mxu0 %v1368
        %1435 = vmatprep.subr.bf16.mxu0 0
        %1436 = vmatpush1.bf16.msra.mxu0 %v1369
        %1437 = vmatprep.subr.bf16.mxu0 0
        %1438 = vmatpush1.bf16.msra.mxu0 %v1370
        %1439 = vmatprep.subr.bf16.mxu0 0
        %1440 = vmatpush1.bf16.msra.mxu0 %v1371
        %1441 = vmatprep.subr.bf16.mxu0 0
        %1442 = vmatpush1.bf16.msra.mxu0 %v1372
        %1443 = vmatprep.subr.bf16.mxu0 0
        %1444 = vmatpush1.bf16.msra.mxu0 %v1373
        %1445 = vmatprep.subr.bf16.mxu0 0
        %1446 = vmatpush1.bf16.msra.mxu0 %v1374
        %1447 = vmatprep.subr.bf16.mxu0 0
        %1448 = vmatpush1.bf16.msra.mxu0 %v1375
        %1449 = vmatprep.subr.bf16.mxu0 0
        %1450 = vmatpush1.bf16.msra.mxu0 %v1376
        %1451 = vmatprep.subr.bf16.mxu0 0
        %1452 = vmatpush1.bf16.msra.mxu0 %v1377
        %1453 = vmatprep.subr.bf16.mxu0 0
        %1454 = vmatpush1.bf16.msra.mxu0 %v1378
        %1455 = vmatprep.subr.bf16.mxu0 0
        %1456 = vmatpush1.bf16.msra.mxu0 %v1379
        %1457 = vmatprep.subr.bf16.mxu0 0
        %1458 = vmatpush1.bf16.msra.mxu0 %v1380
        %1459 = vmatprep.subr.bf16.mxu0 0
        %1460 = vmatpush1.bf16.msra.mxu0 %v1381
        %1461 = vmatprep.subr.bf16.mxu0 0
        %1462 = vmatpush1.bf16.msra.mxu0 %v1382
        %1463 = vmatprep.mubr.bf16.mxu0 %v920
        %1464 = vmatmul.mubr.bf16.gmra.mrb[0].mxu0 %v919
        %v1465 = vpop.f32.mrb[0].mxu0
        %v1466 = vadd.f32 %v437, %v1465
        %v1467 = vpop.f32.mrb[0].mxu0
        %v1468 = vpop.f32.mrb[0].mxu0
        %v1469 = vadd.f32 %v437, %v1468
        %v1470 = vpop.f32.mrb[0].mxu0
        %1471 = vmatprep.mubr.bf16.mxu0 %v924
        %1472 = vmatmul.mubr.bf16.gmra.mrb[0].mxu0 %v923
        %v1473 = vpop.f32.mrb[0].mxu0
        %v1474 = vadd.f32 %v437, %v1473
        %v1475 = vpop.f32.mrb[0].mxu0
        %v1476 = vpop.f32.mrb[0].mxu0
        %v1477 = vadd.f32 %v437, %v1476
        %v1478 = vpop.f32.mrb[0].mxu0
        %1479 = vmatprep.mubr.bf16.mxu0 %v928
        %1480 = vmatmul.mubr.bf16.gmra.mrb[0].mxu0 %v927
        %v1481 = vpop.f32.mrb[0].mxu0
        %v1482 = vadd.f32 %v437, %v1481
        %v1483 = vpop.f32.mrb[0].mxu0
        %v1484 = vpop.f32.mrb[0].mxu0
        %v1485 = vadd.f32 %v437, %v1484
        %v1486 = vpop.f32.mrb[0].mxu0
        %1487 = vmatprep.mubr.bf16.mxu0 %v932
        %1488 = vmatmul.mubr.bf16.gmra.mrb[0].mxu0 %v931
        %v1489 = vpop.f32.mrb[0].mxu0
        %v1490 = vadd.f32 %v437, %v1489
        %v1491 = vpop.f32.mrb[0].mxu0
        %v1492 = vpop.f32.mrb[0].mxu0
        %v1493 = vadd.f32 %v437, %v1492
        %v1494 = vpop.f32.mrb[0].mxu0
        %1495 = vmatprep.mubr.bf16.mxu0 %v936
        %1496 = vmatmul.mubr.bf16.gmra.mrb[0].mxu0 %v935
        %v1497 = vpop.f32.mrb[0].mxu0
        %v1498 = vadd.f32 %v437, %v1497
        %v1499 = vpop.f32.mrb[0].mxu0
        %v1500 = vpop.f32.mrb[0].mxu0
        %v1501 = vadd.f32 %v437, %v1500
        %v1502 = vpop.f32.mrb[0].mxu0
        %1503 = vmatprep.mubr.bf16.mxu0 %v940
        %1504 = vmatmul.mubr.bf16.gmra.mrb[0].mxu0 %v939
        %v1505 = vpop.f32.mrb[0].mxu0
        %v1506 = vadd.f32 %v437, %v1505
        %v1507 = vpop.f32.mrb[0].mxu0
        %v1508 = vpop.f32.mrb[0].mxu0
        %v1509 = vadd.f32 %v437, %v1508
        %v1510 = vpop.f32.mrb[0].mxu0
        %1511 = vmatprep.mubr.bf16.mxu0 %v944
        %1512 = vmatmul.mubr.bf16.gmra.mrb[0].mxu0 %v943
        %v1513 = vpop.f32.mrb[0].mxu0
        %v1514 = vadd.f32 %v437, %v1513
        %v1515 = vpop.f32.mrb[0].mxu0
        %v1516 = vpop.f32.mrb[0].mxu0
        %v1517 = vadd.f32 %v437, %v1516
        %v1518 = vpop.f32.mrb[0].mxu0
        %1519 = vmatprep.mubr.bf16.mxu0 %v948
        %1520 = vmatmul.mubr.bf16.gmra.mrb[0].mxu0 %v947
        %v1521 = vpop.f32.mrb[0].mxu0
        %v1522 = vadd.f32 %v437, %v1521
        %v1523 = vpop.f32.mrb[0].mxu0
        %v1524 = vpop.f32.mrb[0].mxu0
        %v1525 = vadd.f32 %v437, %v1524
        %v1526 = vpop.f32.mrb[0].mxu0
        %1527 = vmatprep.mubr.bf16.mxu0 %v952
        %1528 = vmatmul.mubr.bf16.gmra.mrb[0].mxu0 %v951
        %v1529 = vpop.f32.mrb[0].mxu0
        %v1530 = vadd.f32 %v437, %v1529
        %v1531 = vpop.f32.mrb[0].mxu0
        %v1532 = vpop.f32.mrb[0].mxu0
        %v1533 = vadd.f32 %v437, %v1532
        %v1534 = vpop.f32.mrb[0].mxu0
        %1535 = vmatprep.mubr.bf16.mxu0 %v956
        %1536 = vmatmul.mubr.bf16.gmra.mrb[0].mxu0 %v955
        %v1537 = vpop.f32.mrb[0].mxu0
        %v1538 = vadd.f32 %v437, %v1537
        %v1539 = vpop.f32.mrb[0].mxu0
        %v1540 = vpop.f32.mrb[0].mxu0
        %v1541 = vadd.f32 %v437, %v1540
        %v1542 = vpop.f32.mrb[0].mxu0
        %1543 = vmatprep.mubr.bf16.mxu0 %v960
        %1544 = vmatmul.mubr.bf16.gmra.mrb[0].mxu0 %v959
        %v1545 = vpop.f32.mrb[0].mxu0
        %v1546 = vadd.f32 %v437, %v1545
        %v1547 = vpop.f32.mrb[0].mxu0
        %v1548 = vpop.f32.mrb[0].mxu0
        %v1549 = vadd.f32 %v437, %v1548
        %v1550 = vpop.f32.mrb[0].mxu0
        %1551 = vmatprep.mubr.bf16.mxu0 %v964
        %1552 = vmatmul.mubr.bf16.gmra.mrb[0].mxu0 %v963
        %v1553 = vpop.f32.mrb[0].mxu0
        %v1554 = vadd.f32 %v437, %v1553
        %v1555 = vpop.f32.mrb[0].mxu0
        %v1556 = vpop.f32.mrb[0].mxu0
        %v1557 = vadd.f32 %v437, %v1556
        %v1558 = vpop.f32.mrb[0].mxu0
        %1559 = vmatprep.mubr.bf16.mxu0 %v968
        %1560 = vmatmul.mubr.bf16.gmra.mrb[0].mxu0 %v967
        %v1561 = vpop.f32.mrb[0].mxu0
        %v1562 = vadd.f32 %v437, %v1561
        %v1563 = vpop.f32.mrb[0].mxu0
        %v1564 = vpop.f32.mrb[0].mxu0
        %v1565 = vadd.f32 %v437, %v1564
        %v1566 = vpop.f32.mrb[0].mxu0
        %1567 = vmatprep.mubr.bf16.mxu0 %v972
        %1568 = vmatmul.mubr.bf16.gmra.mrb[0].mxu0 %v971
        %v1569 = vpop.f32.mrb[0].mxu0
        %v1570 = vadd.f32 %v437, %v1569
        %v1571 = vpop.f32.mrb[0].mxu0
        %v1572 = vpop.f32.mrb[0].mxu0
        %v1573 = vadd.f32 %v437, %v1572
        %v1574 = vpop.f32.mrb[0].mxu0
        %1575 = vmatprep.mubr.bf16.mxu0 %v976
        %1576 = vmatmul.mubr.bf16.gmra.mrb[0].mxu0 %v975
        %v1577 = vpop.f32.mrb[0].mxu0
        %v1578 = vadd.f32 %v437, %v1577
        %v1579 = vpop.f32.mrb[0].mxu0
        %v1580 = vpop.f32.mrb[0].mxu0
        %v1581 = vadd.f32 %v437, %v1580
        %v1582 = vpop.f32.mrb[0].mxu0
        %1583 = vmatprep.mubr.bf16.mxu0 %v980
        %1584 = vmatmul.mubr.bf16.gmra.mrb[0].mxu0 %v979
        %v1585 = vpop.f32.mrb[0].mxu0
        %v1586 = vadd.f32 %v437, %v1585
        %v1587 = vpop.f32.mrb[0].mxu0
        %v1588 = vpop.f32.mrb[0].mxu0
        %v1589 = vadd.f32 %v437, %v1588
        %v1590 = vpop.f32.mrb[0].mxu0
        %1591 = vmatprep.mubr.bf16.mxu0 %v984
        %1592 = vmatmul.mubr.bf16.gmra.mrb[0].mxu0 %v983
        %v1593 = vpop.f32.mrb[0].mxu0
        %v1594 = vadd.f32 %v437, %v1593
        %v1595 = vpop.f32.mrb[0].mxu0
        %v1596 = vpop.f32.mrb[0].mxu0
        %v1597 = vadd.f32 %v437, %v1596
        %v1598 = vpop.f32.mrb[0].mxu0
        %1599 = vmatprep.mubr.bf16.mxu0 %v988
        %1600 = vmatmul.mubr.bf16.gmra.mrb[0].mxu0 %v987
        %v1601 = vpop.f32.mrb[0].mxu0
        %v1602 = vadd.f32 %v437, %v1601
        %v1603 = vpop.f32.mrb[0].mxu0
        %v1604 = vpop.f32.mrb[0].mxu0
        %v1605 = vadd.f32 %v437, %v1604
        %v1606 = vpop.f32.mrb[0].mxu0
        %1607 = vmatprep.mubr.bf16.mxu0 %v992
        %1608 = vmatmul.mubr.bf16.gmra.mrb[0].mxu0 %v991
        %v1609 = vpop.f32.mrb[0].mxu0
        %v1610 = vadd.f32 %v437, %v1609
        %v1611 = vpop.f32.mrb[0].mxu0
        %v1612 = vpop.f32.mrb[0].mxu0
        %v1613 = vadd.f32 %v437, %v1612
        %v1614 = vpop.f32.mrb[0].mxu0
        %1615 = vmatprep.mubr.bf16.mxu0 %v996
        %1616 = vmatmul.mubr.bf16.gmra.mrb[0].mxu0 %v995
        %v1617 = vpop.f32.mrb[0].mxu0
        %v1618 = vadd.f32 %v437, %v1617
        %v1619 = vpop.f32.mrb[0].mxu0
        %v1620 = vpop.f32.mrb[0].mxu0
        %v1621 = vadd.f32 %v437, %v1620
        %v1622 = vpop.f32.mrb[0].mxu0
        %1623 = vmatprep.mubr.bf16.mxu0 %v1000
        %1624 = vmatmul.mubr.bf16.gmra.mrb[0].mxu0 %v999
        %v1625 = vpop.f32.mrb[0].mxu0
        %v1626 = vadd.f32 %v437, %v1625
        %v1627 = vpop.f32.mrb[0].mxu0
        %v1628 = vpop.f32.mrb[0].mxu0
        %v1629 = vadd.f32 %v437, %v1628
        %v1630 = vpop.f32.mrb[0].mxu0
        %1631 = vmatprep.mubr.bf16.mxu0 %v1004
        %1632 = vmatmul.mubr.bf16.gmra.mrb[0].mxu0 %v1003
        %v1633 = vpop.f32.mrb[0].mxu0
        %v1634 = vadd.f32 %v437, %v1633
        %v1635 = vpop.f32.mrb[0].mxu0
        %v1636 = vpop.f32.mrb[0].mxu0
        %v1637 = vadd.f32 %v437, %v1636
        %v1638 = vpop.f32.mrb[0].mxu0
        %1639 = vmatprep.mubr.bf16.mxu0 %v1008
        %1640 = vmatmul.mubr.bf16.gmra.mrb[0].mxu0 %v1007
        %v1641 = vpop.f32.mrb[0].mxu0
        %v1642 = vadd.f32 %v437, %v1641
        %v1643 = vpop.f32.mrb[0].mxu0
        %v1644 = vpop.f32.mrb[0].mxu0
        %v1645 = vadd.f32 %v437, %v1644
        %v1646 = vpop.f32.mrb[0].mxu0
        %1647 = vmatprep.mubr.bf16.mxu0 %v1012
        %1648 = vmatmul.mubr.bf16.gmra.mrb[0].mxu0 %v1011
        %v1649 = vpop.f32.mrb[0].mxu0
        %v1650 = vadd.f32 %v437, %v1649
        %v1651 = vpop.f32.mrb[0].mxu0
        %v1652 = vpop.f32.mrb[0].mxu0
        %v1653 = vadd.f32 %v437, %v1652
        %v1654 = vpop.f32.mrb[0].mxu0
        %1655 = vmatprep.mubr.bf16.mxu0 %v1016
        %1656 = vmatmul.mubr.bf16.gmra.mrb[0].mxu0 %v1015
        %v1657 = vpop.f32.mrb[0].mxu0
        %v1658 = vadd.f32 %v437, %v1657
        %v1659 = vpop.f32.mrb[0].mxu0
        %v1660 = vpop.f32.mrb[0].mxu0
        %v1661 = vadd.f32 %v437, %v1660
        %v1662 = vpop.f32.mrb[0].mxu0
        %1663 = vmatprep.mubr.bf16.mxu0 %v1020
        %1664 = vmatmul.mubr.bf16.gmra.mrb[0].mxu0 %v1019
        %v1665 = vpop.f32.mrb[0].mxu0
        %v1666 = vadd.f32 %v437, %v1665
        %v1667 = vpop.f32.mrb[0].mxu0
        %v1668 = vpop.f32.mrb[0].mxu0
        %v1669 = vadd.f32 %v437, %v1668
        %v1670 = vpop.f32.mrb[0].mxu0
        %1671 = vmatprep.mubr.bf16.mxu0 %v1024
        %1672 = vmatmul.mubr.bf16.gmra.mrb[0].mxu0 %v1023
        %v1673 = vpop.f32.mrb[0].mxu0
        %v1674 = vadd.f32 %v437, %v1673
        %v1675 = vpop.f32.mrb[0].mxu0
        %v1676 = vpop.f32.mrb[0].mxu0
        %v1677 = vadd.f32 %v437, %v1676
        %v1678 = vpop.f32.mrb[0].mxu0
        %1679 = vmatprep.mubr.bf16.mxu0 %v1028
        %1680 = vmatmul.mubr.bf16.gmra.mrb[0].mxu0 %v1027
        %v1681 = vpop.f32.mrb[0].mxu0
        %v1682 = vadd.f32 %v437, %v1681
        %v1683 = vpop.f32.mrb[0].mxu0
        %v1684 = vpop.f32.mrb[0].mxu0
        %v1685 = vadd.f32 %v437, %v1684
        %v1686 = vpop.f32.mrb[0].mxu0
        %1687 = vmatprep.mubr.bf16.mxu0 %v1032
        %1688 = vmatmul.mubr.bf16.gmra.mrb[0].mxu0 %v1031
        %v1689 = vpop.f32.mrb[0].mxu0
        %v1690 = vadd.f32 %v437, %v1689
        %v1691 = vpop.f32.mrb[0].mxu0
        %v1692 = vpop.f32.mrb[0].mxu0
        %v1693 = vadd.f32 %v437, %v1692
        %v1694 = vpop.f32.mrb[0].mxu0
        %1695 = vmatprep.mubr.bf16.mxu0 %v1036
        %1696 = vmatmul.mubr.bf16.gmra.mrb[0].mxu0 %v1035
        %v1697 = vpop.f32.mrb[0].mxu0
        %v1698 = vadd.f32 %v437, %v1697
        %v1699 = vpop.f32.mrb[0].mxu0
        %v1700 = vpop.f32.mrb[0].mxu0
        %v1701 = vadd.f32 %v437, %v1700
        %v1702 = vpop.f32.mrb[0].mxu0
        %1703 = vmatprep.mubr.bf16.mxu0 %v1040
        %1704 = vmatmul.mubr.bf16.gmra.mrb[0].mxu0 %v1039
        %v1705 = vpop.f32.mrb[0].mxu0
        %v1706 = vadd.f32 %v437, %v1705
        %v1707 = vpop.f32.mrb[0].mxu0
        %v1708 = vpop.f32.mrb[0].mxu0
        %v1709 = vadd.f32 %v437, %v1708
        %v1710 = vpop.f32.mrb[0].mxu0
        %1711 = vmatprep.mubr.bf16.mxu0 %v1044
        %1712 = vmatmul.mubr.bf16.gmra.mrb[0].mxu0 %v1043
        %v1713 = vpop.f32.mrb[0].mxu0
        %v1714 = vadd.f32 %v437, %v1713
        %v1715 = vpop.f32.mrb[0].mxu0
        %v1716 = vpop.f32.mrb[0].mxu0
        %v1717 = vadd.f32 %v437, %v1716
        %v1718 = vpop.f32.mrb[0].mxu0
        %1719 = vmatprep.mubr.bf16.mxu0 %v1048
        %1720 = vmatmul.mubr.bf16.gmra.mrb[0].mxu0 %v1047
        %v1721 = vpop.f32.mrb[0].mxu0
        %v1722 = vadd.f32 %v437, %v1721
        %v1723 = vpop.f32.mrb[0].mxu0
        %v1724 = vpop.f32.mrb[0].mxu0
        %v1725 = vadd.f32 %v437, %v1724
        %v1726 = vpop.f32.mrb[0].mxu0
        %1727 = vmatprep.mubr.bf16.mxu0 %v1052
        %1728 = vmatmul.mubr.bf16.gmra.mrb[0].mxu0 %v1051
        %v1729 = vpop.f32.mrb[0].mxu0
        %v1730 = vadd.f32 %v437, %v1729
        %v1731 = vpop.f32.mrb[0].mxu0
        %v1732 = vpop.f32.mrb[0].mxu0
        %v1733 = vadd.f32 %v437, %v1732
        %v1734 = vpop.f32.mrb[0].mxu0
        %1735 = vmatprep.mubr.bf16.mxu0 %v1056
        %1736 = vmatmul.mubr.bf16.gmra.mrb[0].mxu0 %v1055
        %v1737 = vpop.f32.mrb[0].mxu0
        %v1738 = vadd.f32 %v437, %v1737
        %v1739 = vpop.f32.mrb[0].mxu0
        %v1740 = vpop.f32.mrb[0].mxu0
        %v1741 = vadd.f32 %v437, %v1740
        %v1742 = vpop.f32.mrb[0].mxu0
        %1743 = vmatprep.mubr.bf16.mxu0 %v1060
        %1744 = vmatmul.mubr.bf16.gmra.mrb[0].mxu0 %v1059
        %v1745 = vpop.f32.mrb[0].mxu0
        %v1746 = vadd.f32 %v437, %v1745
        %v1747 = vpop.f32.mrb[0].mxu0
        %v1748 = vpop.f32.mrb[0].mxu0
        %v1749 = vadd.f32 %v437, %v1748
        %v1750 = vpop.f32.mrb[0].mxu0
        %1751 = vmatprep.mubr.bf16.mxu0 %v1064
        %1752 = vmatmul.mubr.bf16.gmra.mrb[0].mxu0 %v1063
        %v1753 = vpop.f32.mrb[0].mxu0
        %v1754 = vadd.f32 %v437, %v1753
        %v1755 = vpop.f32.mrb[0].mxu0
        %v1756 = vpop.f32.mrb[0].mxu0
        %v1757 = vadd.f32 %v437, %v1756
        %v1758 = vpop.f32.mrb[0].mxu0
        %1759 = vmatprep.mubr.bf16.mxu0 %v1068
        %1760 = vmatmul.mubr.bf16.gmra.mrb[0].mxu0 %v1067
        %v1761 = vpop.f32.mrb[0].mxu0
        %v1762 = vadd.f32 %v437, %v1761
        %v1763 = vpop.f32.mrb[0].mxu0
        %v1764 = vpop.f32.mrb[0].mxu0
        %v1765 = vadd.f32 %v437, %v1764
        %v1766 = vpop.f32.mrb[0].mxu0
        %1767 = vmatprep.mubr.bf16.mxu0 %v1072
        %1768 = vmatmul.mubr.bf16.gmra.mrb[0].mxu0 %v1071
        %v1769 = vpop.f32.mrb[0].mxu0
        %v1770 = vadd.f32 %v437, %v1769
        %v1771 = vpop.f32.mrb[0].mxu0
        %v1772 = vpop.f32.mrb[0].mxu0
        %v1773 = vadd.f32 %v437, %v1772
        %v1774 = vpop.f32.mrb[0].mxu0
        %1775 = vmatprep.mubr.bf16.mxu0 %v1076
        %1776 = vmatmul.mubr.bf16.gmra.mrb[0].mxu0 %v1075
        %v1777 = vpop.f32.mrb[0].mxu0
        %v1778 = vadd.f32 %v437, %v1777
        %v1779 = vpop.f32.mrb[0].mxu0
        %v1780 = vpop.f32.mrb[0].mxu0
        %v1781 = vadd.f32 %v437, %v1780
        %v1782 = vpop.f32.mrb[0].mxu0
        %1783 = vdwg.mxu0
        %1784 = vmatprep.subr.bf16.mxu0 0
        %1785 = vmatpush1.bf16.msra.mxu0 %v1383
        %1786 = vmatprep.subr.bf16.mxu0 0
        %1787 = vmatpush1.bf16.msra.mxu0 %v1384
        %1788 = vmatprep.subr.bf16.mxu0 0
        %1789 = vmatpush1.bf16.msra.mxu0 %v1385
        %1790 = vmatprep.subr.bf16.mxu0 0
        %1791 = vmatpush1.bf16.msra.mxu0 %v1386
        %1792 = vmatprep.subr.bf16.mxu0 0
        %1793 = vmatpush1.bf16.msra.mxu0 %v1387
        %1794 = vmatprep.subr.bf16.mxu0 0
        %1795 = vmatpush1.bf16.msra.mxu0 %v1388
        %1796 = vmatprep.subr.bf16.mxu0 0
        %1797 = vmatpush1.bf16.msra.mxu0 %v1389
        %1798 = vmatprep.subr.bf16.mxu0 0
        %1799 = vmatpush1.bf16.msra.mxu0 %v1390
        %1800 = vmatprep.subr.bf16.mxu0 0
        %1801 = vmatpush1.bf16.msra.mxu0 %v1391
        %1802 = vmatprep.subr.bf16.mxu0 0
        %1803 = vmatpush1.bf16.msra.mxu0 %v1392
        %1804 = vmatprep.subr.bf16.mxu0 0
        %1805 = vmatpush1.bf16.msra.mxu0 %v1393
        %1806 = vmatprep.subr.bf16.mxu0 0
        %1807 = vmatpush1.bf16.msra.mxu0 %v1394
        %1808 = vmatprep.subr.bf16.mxu0 0
        %1809 = vmatpush1.bf16.msra.mxu0 %v1395
        %1810 = vmatprep.subr.bf16.mxu0 0
        %1811 = vmatpush1.bf16.msra.mxu0 %v1396
        %1812 = vmatprep.subr.bf16.mxu0 0
        %1813 = vmatpush1.bf16.msra.mxu0 %v1397
        %1814 = vmatprep.subr.bf16.mxu0 0
        %1815 = vmatpush1.bf16.msra.mxu0 %v1398
        %1816 = vmatprep.mubr.bf16.mxu0 %v922
        %1817 = vmatmul.mubr.bf16.gmra.mrb[0].mxu0 %v921
        %v1818 = vpop.f32.mrb[0].mxu0
        %v1819 = vadd.f32 %v1466, %v1818
        %v1820 = vpop.f32.mrb[0].mxu0
        %v1821 = vpop.f32.mrb[0].mxu0
        %v1822 = vadd.f32 %v1469, %v1821
        %v1823 = vpop.f32.mrb[0].mxu0
        %1824 = vmatprep.mubr.bf16.mxu0 %v926
        %1825 = vmatmul.mubr.bf16.gmra.mrb[0].mxu0 %v925
        %v1826 = vpop.f32.mrb[0].mxu0
        %v1827 = vadd.f32 %v1474, %v1826
        %v1828 = vpop.f32.mrb[0].mxu0
        %v1829 = vpop.f32.mrb[0].mxu0
        %v1830 = vadd.f32 %v1477, %v1829
        %v1831 = vpop.f32.mrb[0].mxu0
        %1832 = vmatprep.mubr.bf16.mxu0 %v930
        %1833 = vmatmul.mubr.bf16.gmra.mrb[0].mxu0 %v929
        %v1834 = vpop.f32.mrb[0].mxu0
        %v1835 = vadd.f32 %v1482, %v1834
        %v1836 = vpop.f32.mrb[0].mxu0
        %v1837 = vpop.f32.mrb[0].mxu0
        %v1838 = vadd.f32 %v1485, %v1837
        %v1839 = vpop.f32.mrb[0].mxu0
        %1840 = vmatprep.mubr.bf16.mxu0 %v934
        %1841 = vmatmul.mubr.bf16.gmra.mrb[0].mxu0 %v933
        %v1842 = vpop.f32.mrb[0].mxu0
        %v1843 = vadd.f32 %v1490, %v1842
        %v1844 = vpop.f32.mrb[0].mxu0
        %v1845 = vpop.f32.mrb[0].mxu0
        %v1846 = vadd.f32 %v1493, %v1845
        %v1847 = vpop.f32.mrb[0].mxu0
        %1848 = vmatprep.mubr.bf16.mxu0 %v938
        %1849 = vmatmul.mubr.bf16.gmra.mrb[0].mxu0 %v937
        %v1850 = vpop.f32.mrb[0].mxu0
        %v1851 = vadd.f32 %v1498, %v1850
        %v1852 = vpop.f32.mrb[0].mxu0
        %v1853 = vpop.f32.mrb[0].mxu0
        %v1854 = vadd.f32 %v1501, %v1853
        %v1855 = vpop.f32.mrb[0].mxu0
        %1856 = vmatprep.mubr.bf16.mxu0 %v942
        %1857 = vmatmul.mubr.bf16.gmra.mrb[0].mxu0 %v941
        %v1858 = vpop.f32.mrb[0].mxu0
        %v1859 = vadd.f32 %v1506, %v1858
        %v1860 = vpop.f32.mrb[0].mxu0
        %v1861 = vpop.f32.mrb[0].mxu0
        %v1862 = vadd.f32 %v1509, %v1861
        %v1863 = vpop.f32.mrb[0].mxu0
        %1864 = vmatprep.mubr.bf16.mxu0 %v946
        %1865 = vmatmul.mubr.bf16.gmra.mrb[0].mxu0 %v945
        %v1866 = vpop.f32.mrb[0].mxu0
        %v1867 = vadd.f32 %v1514, %v1866
        %v1868 = vpop.f32.mrb[0].mxu0
        %v1869 = vpop.f32.mrb[0].mxu0
        %v1870 = vadd.f32 %v1517, %v1869
        %v1871 = vpop.f32.mrb[0].mxu0
        %1872 = vmatprep.mubr.bf16.mxu0 %v950
        %1873 = vmatmul.mubr.bf16.gmra.mrb[0].mxu0 %v949
        %v1874 = vpop.f32.mrb[0].mxu0
        %v1875 = vadd.f32 %v1522, %v1874
        %v1876 = vpop.f32.mrb[0].mxu0
        %v1877 = vpop.f32.mrb[0].mxu0
        %v1878 = vadd.f32 %v1525, %v1877
        %v1879 = vpop.f32.mrb[0].mxu0
        %1880 = vmatprep.mubr.bf16.mxu0 %v954
        %1881 = vmatmul.mubr.bf16.gmra.mrb[0].mxu0 %v953
        %v1882 = vpop.f32.mrb[0].mxu0
        %v1883 = vadd.f32 %v1530, %v1882
        %v1884 = vpop.f32.mrb[0].mxu0
        %v1885 = vpop.f32.mrb[0].mxu0
        %v1886 = vadd.f32 %v1533, %v1885
        %v1887 = vpop.f32.mrb[0].mxu0
        %1888 = vmatprep.mubr.bf16.mxu0 %v958
        %1889 = vmatmul.mubr.bf16.gmra.mrb[0].mxu0 %v957
        %v1890 = vpop.f32.mrb[0].mxu0
        %v1891 = vadd.f32 %v1538, %v1890
        %v1892 = vpop.f32.mrb[0].mxu0
        %v1893 = vpop.f32.mrb[0].mxu0
        %v1894 = vadd.f32 %v1541, %v1893
        %v1895 = vpop.f32.mrb[0].mxu0
        %1896 = vmatprep.mubr.bf16.mxu0 %v962
        %1897 = vmatmul.mubr.bf16.gmra.mrb[0].mxu0 %v961
        %v1898 = vpop.f32.mrb[0].mxu0
        %v1899 = vadd.f32 %v1546, %v1898
        %v1900 = vpop.f32.mrb[0].mxu0
        %v1901 = vpop.f32.mrb[0].mxu0
        %v1902 = vadd.f32 %v1549, %v1901
        %v1903 = vpop.f32.mrb[0].mxu0
        %1904 = vmatprep.mubr.bf16.mxu0 %v966
        %1905 = vmatmul.mubr.bf16.gmra.mrb[0].mxu0 %v965
        %v1906 = vpop.f32.mrb[0].mxu0
        %v1907 = vadd.f32 %v1554, %v1906
        %v1908 = vpop.f32.mrb[0].mxu0
        %v1909 = vpop.f32.mrb[0].mxu0
        %v1910 = vadd.f32 %v1557, %v1909
        %v1911 = vpop.f32.mrb[0].mxu0
        %1912 = vmatprep.mubr.bf16.mxu0 %v970
        %1913 = vmatmul.mubr.bf16.gmra.mrb[0].mxu0 %v969
        %v1914 = vpop.f32.mrb[0].mxu0
        %v1915 = vadd.f32 %v1562, %v1914
        %v1916 = vpop.f32.mrb[0].mxu0
        %v1917 = vpop.f32.mrb[0].mxu0
        %v1918 = vadd.f32 %v1565, %v1917
        %v1919 = vpop.f32.mrb[0].mxu0
        %1920 = vmatprep.mubr.bf16.mxu0 %v974
        %1921 = vmatmul.mubr.bf16.gmra.mrb[0].mxu0 %v973
        %v1922 = vpop.f32.mrb[0].mxu0
        %v1923 = vadd.f32 %v1570, %v1922
        %v1924 = vpop.f32.mrb[0].mxu0
        %v1925 = vpop.f32.mrb[0].mxu0
        %v1926 = vadd.f32 %v1573, %v1925
        %v1927 = vpop.f32.mrb[0].mxu0
        %1928 = vmatprep.mubr.bf16.mxu0 %v978
        %1929 = vmatmul.mubr.bf16.gmra.mrb[0].mxu0 %v977
        %v1930 = vpop.f32.mrb[0].mxu0
        %v1931 = vadd.f32 %v1578, %v1930
        %v1932 = vpop.f32.mrb[0].mxu0
        %v1933 = vpop.f32.mrb[0].mxu0
        %v1934 = vadd.f32 %v1581, %v1933
        %v1935 = vpop.f32.mrb[0].mxu0
        %1936 = vmatprep.mubr.bf16.mxu0 %v982
        %1937 = vmatmul.mubr.bf16.gmra.mrb[0].mxu0 %v981
        %v1938 = vpop.f32.mrb[0].mxu0
        %v1939 = vadd.f32 %v1586, %v1938
        %v1940 = vpop.f32.mrb[0].mxu0
        %v1941 = vpop.f32.mrb[0].mxu0
        %v1942 = vadd.f32 %v1589, %v1941
        %v1943 = vpop.f32.mrb[0].mxu0
        %1944 = vmatprep.mubr.bf16.mxu0 %v986
        %1945 = vmatmul.mubr.bf16.gmra.mrb[0].mxu0 %v985
        %v1946 = vpop.f32.mrb[0].mxu0
        %v1947 = vadd.f32 %v1594, %v1946
        %v1948 = vpop.f32.mrb[0].mxu0
        %v1949 = vpop.f32.mrb[0].mxu0
        %v1950 = vadd.f32 %v1597, %v1949
        %v1951 = vpop.f32.mrb[0].mxu0
        %1952 = vmatprep.mubr.bf16.mxu0 %v990
        %1953 = vmatmul.mubr.bf16.gmra.mrb[0].mxu0 %v989
        %v1954 = vpop.f32.mrb[0].mxu0
        %v1955 = vadd.f32 %v1602, %v1954
        %v1956 = vpop.f32.mrb[0].mxu0
        %v1957 = vpop.f32.mrb[0].mxu0
        %v1958 = vadd.f32 %v1605, %v1957
        %v1959 = vpop.f32.mrb[0].mxu0
        %1960 = vmatprep.mubr.bf16.mxu0 %v994
        %1961 = vmatmul.mubr.bf16.gmra.mrb[0].mxu0 %v993
        %v1962 = vpop.f32.mrb[0].mxu0
        %v1963 = vadd.f32 %v1610, %v1962
        %v1964 = vpop.f32.mrb[0].mxu0
        %v1965 = vpop.f32.mrb[0].mxu0
        %v1966 = vadd.f32 %v1613, %v1965
        %v1967 = vpop.f32.mrb[0].mxu0
        %1968 = vmatprep.mubr.bf16.mxu0 %v998
        %1969 = vmatmul.mubr.bf16.gmra.mrb[0].mxu0 %v997
        %v1970 = vpop.f32.mrb[0].mxu0
        %v1971 = vadd.f32 %v1618, %v1970
        %v1972 = vpop.f32.mrb[0].mxu0
        %v1973 = vpop.f32.mrb[0].mxu0
        %v1974 = vadd.f32 %v1621, %v1973
        %v1975 = vpop.f32.mrb[0].mxu0
        %1976 = vmatprep.mubr.bf16.mxu0 %v1002
        %1977 = vmatmul.mubr.bf16.gmra.mrb[0].mxu0 %v1001
        %v1978 = vpop.f32.mrb[0].mxu0
        %v1979 = vadd.f32 %v1626, %v1978
        %v1980 = vpop.f32.mrb[0].mxu0
        %v1981 = vpop.f32.mrb[0].mxu0
        %v1982 = vadd.f32 %v1629, %v1981
        %v1983 = vpop.f32.mrb[0].mxu0
        %1984 = vmatprep.mubr.bf16.mxu0 %v1006
        %1985 = vmatmul.mubr.bf16.gmra.mrb[0].mxu0 %v1005
        %v1986 = vpop.f32.mrb[0].mxu0
        %v1987 = vadd.f32 %v1634, %v1986
        %v1988 = vpop.f32.mrb[0].mxu0
        %v1989 = vpop.f32.mrb[0].mxu0
        %v1990 = vadd.f32 %v1637, %v1989
        %v1991 = vpop.f32.mrb[0].mxu0
        %1992 = vmatprep.mubr.bf16.mxu0 %v1010
        %1993 = vmatmul.mubr.bf16.gmra.mrb[0].mxu0 %v1009
        %v1994 = vpop.f32.mrb[0].mxu0
        %v1995 = vadd.f32 %v1642, %v1994
        %v1996 = vpop.f32.mrb[0].mxu0
        %v1997 = vpop.f32.mrb[0].mxu0
        %v1998 = vadd.f32 %v1645, %v1997
        %v1999 = vpop.f32.mrb[0].mxu0
        %2000 = vmatprep.mubr.bf16.mxu0 %v1014
        %2001 = vmatmul.mubr.bf16.gmra.mrb[0].mxu0 %v1013
        %v2002 = vpop.f32.mrb[0].mxu0
        %v2003 = vadd.f32 %v1650, %v2002
        %v2004 = vpop.f32.mrb[0].mxu0
        %v2005 = vpop.f32.mrb[0].mxu0
        %v2006 = vadd.f32 %v1653, %v2005
        %v2007 = vpop.f32.mrb[0].mxu0
        %2008 = vmatprep.mubr.bf16.mxu0 %v1018
        %2009 = vmatmul.mubr.bf16.gmra.mrb[0].mxu0 %v1017
        %v2010 = vpop.f32.mrb[0].mxu0
        %v2011 = vadd.f32 %v1658, %v2010
        %v2012 = vpop.f32.mrb[0].mxu0
        %v2013 = vpop.f32.mrb[0].mxu0
        %v2014 = vadd.f32 %v1661, %v2013
        %v2015 = vpop.f32.mrb[0].mxu0
        %2016 = vmatprep.mubr.bf16.mxu0 %v1022
        %2017 = vmatmul.mubr.bf16.gmra.mrb[0].mxu0 %v1021
        %v2018 = vpop.f32.mrb[0].mxu0
        %v2019 = vadd.f32 %v1666, %v2018
        %v2020 = vpop.f32.mrb[0].mxu0
        %v2021 = vpop.f32.mrb[0].mxu0
        %v2022 = vadd.f32 %v1669, %v2021
        %v2023 = vpop.f32.mrb[0].mxu0
        %2024 = vmatprep.mubr.bf16.mxu0 %v1026
        %2025 = vmatmul.mubr.bf16.gmra.mrb[0].mxu0 %v1025
        %v2026 = vpop.f32.mrb[0].mxu0
        %v2027 = vadd.f32 %v1674, %v2026
        %v2028 = vpop.f32.mrb[0].mxu0
        %v2029 = vpop.f32.mrb[0].mxu0
        %v2030 = vadd.f32 %v1677, %v2029
        %v2031 = vpop.f32.mrb[0].mxu0
        %2032 = vmatprep.mubr.bf16.mxu0 %v1030
        %2033 = vmatmul.mubr.bf16.gmra.mrb[0].mxu0 %v1029
        %v2034 = vpop.f32.mrb[0].mxu0
        %v2035 = vadd.f32 %v1682, %v2034
        %v2036 = vpop.f32.mrb[0].mxu0
        %v2037 = vpop.f32.mrb[0].mxu0
        %v2038 = vadd.f32 %v1685, %v2037
        %v2039 = vpop.f32.mrb[0].mxu0
        %2040 = vmatprep.mubr.bf16.mxu0 %v1034
        %2041 = vmatmul.mubr.bf16.gmra.mrb[0].mxu0 %v1033
        %v2042 = vpop.f32.mrb[0].mxu0
        %v2043 = vadd.f32 %v1690, %v2042
        %v2044 = vpop.f32.mrb[0].mxu0
        %v2045 = vpop.f32.mrb[0].mxu0
        %v2046 = vadd.f32 %v1693, %v2045
        %v2047 = vpop.f32.mrb[0].mxu0
        %2048 = vmatprep.mubr.bf16.mxu0 %v1038
        %2049 = vmatmul.mubr.bf16.gmra.mrb[0].mxu0 %v1037
        %v2050 = vpop.f32.mrb[0].mxu0
        %v2051 = vadd.f32 %v1698, %v2050
        %v2052 = vpop.f32.mrb[0].mxu0
        %v2053 = vpop.f32.mrb[0].mxu0
        %v2054 = vadd.f32 %v1701, %v2053
        %v2055 = vpop.f32.mrb[0].mxu0
        %2056 = vmatprep.mubr.bf16.mxu0 %v1042
        %2057 = vmatmul.mubr.bf16.gmra.mrb[0].mxu0 %v1041
        %v2058 = vpop.f32.mrb[0].mxu0
        %v2059 = vadd.f32 %v1706, %v2058
        %v2060 = vpop.f32.mrb[0].mxu0
        %v2061 = vpop.f32.mrb[0].mxu0
        %v2062 = vadd.f32 %v1709, %v2061
        %v2063 = vpop.f32.mrb[0].mxu0
        %2064 = vmatprep.mubr.bf16.mxu0 %v1046
        %2065 = vmatmul.mubr.bf16.gmra.mrb[0].mxu0 %v1045
        %v2066 = vpop.f32.mrb[0].mxu0
        %v2067 = vadd.f32 %v1714, %v2066
        %v2068 = vpop.f32.mrb[0].mxu0
        %v2069 = vpop.f32.mrb[0].mxu0
        %v2070 = vadd.f32 %v1717, %v2069
        %v2071 = vpop.f32.mrb[0].mxu0
        %2072 = vmatprep.mubr.bf16.mxu0 %v1050
        %2073 = vmatmul.mubr.bf16.gmra.mrb[0].mxu0 %v1049
        %v2074 = vpop.f32.mrb[0].mxu0
        %v2075 = vadd.f32 %v1722, %v2074
        %v2076 = vpop.f32.mrb[0].mxu0
        %v2077 = vpop.f32.mrb[0].mxu0
        %v2078 = vadd.f32 %v1725, %v2077
        %v2079 = vpop.f32.mrb[0].mxu0
        %2080 = vmatprep.mubr.bf16.mxu0 %v1054
        %2081 = vmatmul.mubr.bf16.gmra.mrb[0].mxu0 %v1053
        %v2082 = vpop.f32.mrb[0].mxu0
        %v2083 = vadd.f32 %v1730, %v2082
        %v2084 = vpop.f32.mrb[0].mxu0
        %v2085 = vpop.f32.mrb[0].mxu0
        %v2086 = vadd.f32 %v1733, %v2085
        %v2087 = vpop.f32.mrb[0].mxu0
        %2088 = vmatprep.mubr.bf16.mxu0 %v1058
        %2089 = vmatmul.mubr.bf16.gmra.mrb[0].mxu0 %v1057
        %v2090 = vpop.f32.mrb[0].mxu0
        %v2091 = vadd.f32 %v1738, %v2090
        %v2092 = vpop.f32.mrb[0].mxu0
        %v2093 = vpop.f32.mrb[0].mxu0
        %v2094 = vadd.f32 %v1741, %v2093
        %v2095 = vpop.f32.mrb[0].mxu0
        %2096 = vmatprep.mubr.bf16.mxu0 %v1062
        %2097 = vmatmul.mubr.bf16.gmra.mrb[0].mxu0 %v1061
        %v2098 = vpop.f32.mrb[0].mxu0
        %v2099 = vadd.f32 %v1746, %v2098
        %v2100 = vpop.f32.mrb[0].mxu0
        %v2101 = vpop.f32.mrb[0].mxu0
        %v2102 = vadd.f32 %v1749, %v2101
        %v2103 = vpop.f32.mrb[0].mxu0
        %2104 = vmatprep.mubr.bf16.mxu0 %v1066
        %2105 = vmatmul.mubr.bf16.gmra.mrb[0].mxu0 %v1065
        %v2106 = vpop.f32.mrb[0].mxu0
        %v2107 = vadd.f32 %v1754, %v2106
        %v2108 = vpop.f32.mrb[0].mxu0
        %v2109 = vpop.f32.mrb[0].mxu0
        %v2110 = vadd.f32 %v1757, %v2109
        %v2111 = vpop.f32.mrb[0].mxu0
        %2112 = vmatprep.mubr.bf16.mxu0 %v1070
        %2113 = vmatmul.mubr.bf16.gmra.mrb[0].mxu0 %v1069
        %v2114 = vpop.f32.mrb[0].mxu0
        %v2115 = vadd.f32 %v1762, %v2114
        %v2116 = vpop.f32.mrb[0].mxu0
        %v2117 = vpop.f32.mrb[0].mxu0
        %v2118 = vadd.f32 %v1765, %v2117
        %v2119 = vpop.f32.mrb[0].mxu0
        %2120 = vmatprep.mubr.bf16.mxu0 %v1074
        %2121 = vmatmul.mubr.bf16.gmra.mrb[0].mxu0 %v1073
        %v2122 = vpop.f32.mrb[0].mxu0
        %v2123 = vadd.f32 %v1770, %v2122
        %v2124 = vpop.f32.mrb[0].mxu0
        %v2125 = vpop.f32.mrb[0].mxu0
        %v2126 = vadd.f32 %v1773, %v2125
        %v2127 = vpop.f32.mrb[0].mxu0
        %2128 = vmatprep.mubr.bf16.mxu0 %v1078
        %2129 = vmatmul.mubr.bf16.gmra.mrb[0].mxu0 %v1077
        %v2130 = vpop.f32.mrb[0].mxu0
        %v2131 = vadd.f32 %v1778, %v2130
        %v2132 = vpop.f32.mrb[0].mxu0
        %v2133 = vpop.f32.mrb[0].mxu0
        %v2134 = vadd.f32 %v1781, %v2133
        %v2135 = vpop.f32.mrb[0].mxu0
        %2136 = vdwg.mxu0
        %vm2137 = vcmask 31744
        %2138 = vst.msk [vmem:[%s205] sm:$0xff] %vm2137, %v1819
        %2139 = vst.msk [vmem:[%s205 + $0x8] sm:$0xff] %vm2137, %v1822
        %2140 = vst.msk [vmem:[%s205 + $0x10] sm:$0xff] %vm2137, %v1827
        %2141 = vst.msk [vmem:[%s205 + $0x18] sm:$0xff] %vm2137, %v1830
        %2142 = vst.msk [vmem:[%s205 + $0x20] sm:$0xff] %vm2137, %v1835
        %2143 = vst.msk [vmem:[%s205 + $0x28] sm:$0xff] %vm2137, %v1838
        %2144 = vst.msk [vmem:[%s205 + $0x30] sm:$0xff] %vm2137, %v1843
        %2145 = vst.msk [vmem:[%s205 + $0x38] sm:$0xff] %vm2137, %v1846
        %2146 = vst.msk [vmem:[%s205 + $0x40] sm:$0xff] %vm2137, %v1851
        %2147 = vst.msk [vmem:[%s205 + $0x48] sm:$0xff] %vm2137, %v1854
        %2148 = vst.msk [vmem:[%s205 + $0x50] sm:$0xff] %vm2137, %v1859
        %2149 = vst.msk [vmem:[%s205 + $0x58] sm:$0xff] %vm2137, %v1862
        %2150 = vst.msk [vmem:[%s205 + $0x60] sm:$0xff] %vm2137, %v1867
        %2151 = vst.msk [vmem:[%s205 + $0x68] sm:$0xff] %vm2137, %v1870
        %2152 = vst.msk [vmem:[%s205 + $0x70] sm:$0xff] %vm2137, %v1875
        %2153 = vst.msk [vmem:[%s205 + $0x78] sm:$0xff] %vm2137, %v1878
        %2154 = vst.msk [vmem:[%s205 + $0x80] sm:$0xff] %vm2137, %v1883
        %2155 = vst.msk [vmem:[%s205 + $0x88] sm:$0xff] %vm2137, %v1886
        %2156 = vst.msk [vmem:[%s205 + $0x90] sm:$0xff] %vm2137, %v1891
        %2157 = vst.msk [vmem:[%s205 + $0x98] sm:$0xff] %vm2137, %v1894
        %2158 = vst.msk [vmem:[%s205 + $0xa0] sm:$0xff] %vm2137, %v1899
        %2159 = vst.msk [vmem:[%s205 + $0xa8] sm:$0xff] %vm2137, %v1902
        %2160 = vst.msk [vmem:[%s205 + $0xb0] sm:$0xff] %vm2137, %v1907
        %2161 = vst.msk [vmem:[%s205 + $0xb8] sm:$0xff] %vm2137, %v1910
        %2162 = vst.msk [vmem:[%s205 + $0xc0] sm:$0xff] %vm2137, %v1915
        %2163 = vst.msk [vmem:[%s205 + $0xc8] sm:$0xff] %vm2137, %v1918
        %2164 = vst.msk [vmem:[%s205 + $0xd0] sm:$0xff] %vm2137, %v1923
        %2165 = vst.msk [vmem:[%s205 + $0xd8] sm:$0xff] %vm2137, %v1926
        %2166 = vst.msk [vmem:[%s205 + $0xe0] sm:$0xff] %vm2137, %v1931
        %2167 = vst.msk [vmem:[%s205 + $0xe8] sm:$0xff] %vm2137, %v1934
        %2168 = vst.msk [vmem:[%s205 + $0xf0] sm:$0xff] %vm2137, %v1939
        %2169 = vst.msk [vmem:[%s205 + $0xf8] sm:$0xff] %vm2137, %v1942
        %2170 = vst.msk [vmem:[%s205 + $0x100] sm:$0xff] %vm2137, %v1947
        %2171 = vst.msk [vmem:[%s205 + $0x108] sm:$0xff] %vm2137, %v1950
        %2172 = vst.msk [vmem:[%s205 + $0x110] sm:$0xff] %vm2137, %v1955
        %2173 = vst.msk [vmem:[%s205 + $0x118] sm:$0xff] %vm2137, %v1958
        %2174 = vst.msk [vmem:[%s205 + $0x120] sm:$0xff] %vm2137, %v1963
        %2175 = vst.msk [vmem:[%s205 + $0x128] sm:$0xff] %vm2137, %v1966
        %2176 = vst.msk [vmem:[%s205 + $0x130] sm:$0xff] %vm2137, %v1971
        %2177 = vst.msk [vmem:[%s205 + $0x138] sm:$0xff] %vm2137, %v1974
        %2178 = vst.msk [vmem:[%s205 + $0x140] sm:$0xff] %vm2137, %v1979
        %2179 = vst.msk [vmem:[%s205 + $0x148] sm:$0xff] %vm2137, %v1982
        %2180 = vst.msk [vmem:[%s205 + $0x150] sm:$0xff] %vm2137, %v1987
        %2181 = vst.msk [vmem:[%s205 + $0x158] sm:$0xff] %vm2137, %v1990
        %2182 = vst.msk [vmem:[%s205 + $0x160] sm:$0xff] %vm2137, %v1995
        %2183 = vst.msk [vmem:[%s205 + $0x168] sm:$0xff] %vm2137, %v1998
        %2184 = vst.msk [vmem:[%s205 + $0x170] sm:$0xff] %vm2137, %v2003
        %2185 = vst.msk [vmem:[%s205 + $0x178] sm:$0xff] %vm2137, %v2006
        %2186 = vst.msk [vmem:[%s205 + $0x180] sm:$0xff] %vm2137, %v2011
        %2187 = vst.msk [vmem:[%s205 + $0x188] sm:$0xff] %vm2137, %v2014
        %2188 = vst.msk [vmem:[%s205 + $0x190] sm:$0xff] %vm2137, %v2019
        %2189 = vst.msk [vmem:[%s205 + $0x198] sm:$0xff] %vm2137, %v2022
        %2190 = vst.msk [vmem:[%s205 + $0x1a0] sm:$0xff] %vm2137, %v2027
        %2191 = vst.msk [vmem:[%s205 + $0x1a8] sm:$0xff] %vm2137, %v2030
        %2192 = vst.msk [vmem:[%s205 + $0x1b0] sm:$0xff] %vm2137, %v2035
        %2193 = vst.msk [vmem:[%s205 + $0x1b8] sm:$0xff] %vm2137, %v2038
        %2194 = vst.msk [vmem:[%s205 + $0x1c0] sm:$0xff] %vm2137, %v2043
        %2195 = vst.msk [vmem:[%s205 + $0x1c8] sm:$0xff] %vm2137, %v2046
        %2196 = vst.msk [vmem:[%s205 + $0x1d0] sm:$0xff] %vm2137, %v2051
        %2197 = vst.msk [vmem:[%s205 + $0x1d8] sm:$0xff] %vm2137, %v2054
        %2198 = vst.msk [vmem:[%s205 + $0x1e0] sm:$0xff] %vm2137, %v2059
        %2199 = vst.msk [vmem:[%s205 + $0x1e8] sm:$0xff] %vm2137, %v2062
        %2200 = vst.msk [vmem:[%s205 + $0x1f0] sm:$0xff] %vm2137, %v2067
        %2201 = vst.msk [vmem:[%s205 + $0x1f8] sm:$0xff] %vm2137, %v2070
        %2202 = vst.msk [vmem:[%s205 + $0x200] sm:$0xff] %vm2137, %v2075
        %2203 = vst.msk [vmem:[%s205 + $0x208] sm:$0xff] %vm2137, %v2078
        %2204 = vst.msk [vmem:[%s205 + $0x210] sm:$0xff] %vm2137, %v2083
        %2205 = vst.msk [vmem:[%s205 + $0x218] sm:$0xff] %vm2137, %v2086
        %2206 = vst.msk [vmem:[%s205 + $0x220] sm:$0xff] %vm2137, %v2091
        %2207 = vst.msk [vmem:[%s205 + $0x228] sm:$0xff] %vm2137, %v2094
        %2208 = vst.msk [vmem:[%s205 + $0x230] sm:$0xff] %vm2137, %v2099
        %2209 = vst.msk [vmem:[%s205 + $0x238] sm:$0xff] %vm2137, %v2102
        %2210 = vst.msk [vmem:[%s205 + $0x240] sm:$0xff] %vm2137, %v2107
        %2211 = vst.msk [vmem:[%s205 + $0x248] sm:$0xff] %vm2137, %v2110
        %2212 = vst.msk [vmem:[%s205 + $0x250] sm:$0xff] %vm2137, %v2115
        %2213 = vst.msk [vmem:[%s205 + $0x258] sm:$0xff] %vm2137, %v2118
        %2214 = vst.msk [vmem:[%s205 + $0x260] sm:$0xff] %vm2137, %v2123
        %2215 = vst.msk [vmem:[%s205 + $0x268] sm:$0xff] %vm2137, %v2126
        %2216 = vst.msk [vmem:[%s205 + $0x270] sm:$0xff] %vm2137, %v2131
        %2217 = vst.msk [vmem:[%s205 + $0x278] sm:$0xff] %vm2137, %v2134
        %s2218 = smul.u32 80, %s18
        %p2219 = scmp.lt.s32.totalorder %s2218, 159
        %s2220 = scalar_select %p2219, %s2218, 159
        %s2221 = smul.addr %s2220, 8
        %s2222 = scalar_lea.vmem %s3, %s2221
        // Predicated region
        $region41: #{tpu_custom_call.1} parent=31 // pred_check
          %p2223 = pneg %p104
        $region42: #{tpu_custom_call.1} parent=31 // pred_check_branch
          %2225 = sbr.rel (%p2223) target = $region44
        $region43: #{tpu_custom_call.1} parent=31 // pred_region
          %s2226 = smul.u32 80, %s18
        $region44: #{tpu_custom_call.1} parent=31 // pred_fallthru
          _
      $region32: #{tpu_custom_call.1} parent=5 // pred_fallthru
        _
      %p2227 = scmp.le.s32.totalorder 2, %s13
      // Predicated region
      $region45: #{tpu_custom_call.1} parent=5 // pred_check
        %p2228 = pneg %p2227
      $region46: #{tpu_custom_call.1} parent=5 // pred_check_branch
        %2230 = sbr.rel (%p2228) target = $region48
      $region47: #{tpu_custom_call.1} parent=5 // pred_region
        %s2231 = ssub.s32 %s13, 2
        // Predicated region
        $region49: #{tpu_custom_call.1} parent=47 // pred_check
          %p2232 = pneg %p110
        $region50: #{tpu_custom_call.1} parent=47 // pred_check_branch
          %2234 = sbr.rel (%p2232) target = $region52
        $region51: #{tpu_custom_call.1} parent=47 // pred_region
          %s2235 = smul.u32 80, %s19
          %p2236 = scmp.lt.s32.totalorder %s2235, 159
          %s2237 = scalar_select %p2236, %s2235, 159
          %s2238 = smul.addr %s2237, 8
          %s2239 = scalar_lea.vmem %s3, %s2238
        $region52: #{tpu_custom_call.1} parent=47 // pred_fallthru
          _
      $region48: #{tpu_custom_call.1} parent=5 // pred_fallthru
        _
    $region6: #{tpu_custom_call.1} parent=1 // loop_footer
      %s17 = sadd.s32 1, %s13
    $region7: #{tpu_custom_call.1} parent=1 // loop_footer_branch
      %12 = sbr.rel target = $region3
    $region8: #{tpu_custom_call.1} parent=1 // loop_exit
      _
    %2240 = vsyncpa [#allocation3], 1
    %s2241 = scalar_lea.sflag [#allocation3], 1
    %2242 = vsyncpa %s2241, 1
    %2243 = vsyncpa [#allocation5], 1
    %s2244 = scalar_lea.sflag [#allocation5], 1
    %2245 = vsyncpa %s2244, 1

</llo_original>
